<compile_context>
chip_gen: v7x
topology: tpu7x:2x2x1
jax: 0.10.0
libtpu: 0.0.40
codegen_flags: <defaults>
</compile_context>

<pallas_src>
import numpy as np
import jax
import jax.numpy as jnp
from jax import lax
from jax.experimental import pallas as pl
from jax.experimental.pallas import tpu as pltpu


# ---- module configuration (ConvSamePad(True, IN_CH, OUT_CH, KERNEL_SIZE, STRIDE)) ----
IN_CH = 4
OUT_CH = 8
KERNEL_SIZE = (3, 3)   # torch Conv2d weight is (outC, inC, kH, kW)
STRIDE = (1, 1)


def get_same_pad(h, w, kh, kw, s):
    # verbatim port of the torch helper
    if h % s[0] == 0:
        pad_along_height = max(kh - s[0], 0)
    else:
        pad_along_height = max(kh - h % s[0], 0)
    if w % s[1] == 0:
        pad_along_width = max(kw - s[1], 0)
    else:
        pad_along_width = max(kw - w % s[1], 0)
    pad_top = pad_along_height // 2
    pad_bottom = pad_along_height - pad_top
    pad_left = pad_along_width // 2
    pad_right = pad_along_width - pad_left
    return {'left': pad_left, 'right': pad_right, 'top': pad_top, 'bottom': pad_bottom}


def _reflect_index(i, n):
    """torch-style 'reflect' index (edge not repeated)."""
    while i < 0 or i >= n:
        if i < 0:
            i = -i
        if i >= n:
            i = 2 * (n - 1) - i
    return i


# ------------------------- one-time parameter folding -------------------------
def fold_conv_same_pad_params(weight, bias, time, nc, stride):
    """Fold the ConvSamePad structure into matmul-ready parameters.

    Done ONCE (at parameter-load time in a real model), not per forward call.

    Returns:
      p        (kW, NC, NC)        0/1 lane-permutation matrices: nc-tap shift +
                                   nc reflect-pad + output side-interleave.
      wt       (Cout*T, kW*Cin*T)  weights with the time taps + time reflect-pad
                                   folded into a banded (t, t_in) structure.
      bias_col (Cout*T, 1)         bias expanded over t (added via implicit
                                   lane broadcast in the kernel).
    """
    Cout, Cin, kH, kW = weight.shape
    side = nc // 2
    # module's (quirky) pad bookkeeping, ported verbatim:
    #   time axis padded by (left, right) derived from kH,
    #   nc-half axis padded by (top, bottom) derived from kW.
    sp = get_same_pad(h=side, w=time, kh=kW, kw=kH, s=stride)
    # TODO(synk): only the module's stride (1,1) configuration is folded here;
    # other strides change the output grid and need a different fold.
    assert tuple(stride) == (1, 1)
    T = time
    assert (T + sp['left'] + sp['right'] - kH) + 1 == T
    assert (side + sp['top'] + sp['bottom'] - kW) + 1 == side

    # S[ih, t, u] = 1  iff  u == reflect(t + ih - pad_time_before)
    S = np.zeros((kH, T, T), np.float32)
    for ih in range(kH):
        for t in range(T):
            S[ih, t, _reflect_index(t + ih - sp['left'], T)] = 1.0

    # P[iw, nc_in, nc_out] = 1  iff  nc_in feeds output column nc_out for tap iw
    #   nc_out = 2*w_out + s (interleaved), nc_in = s*side + reflect(w_out+iw-pad)
    P = np.zeros((kW, nc, nc), np.float32)
    for s in range(2):
        for w in range(side):
            for iw in range(kW):
                w_in = _reflect_index(w + iw - sp['top'], side)
                P[iw, s * side + w_in, 2 * w + s] = 1.0

    wt = jnp.einsum('ociw,itu->otwcu', weight.astype(jnp.float32), jnp.asarray(S))
    wt = wt.reshape(Cout * T, kW * Cin * T)
    bias_col = jnp.repeat(bias.astype(jnp.float32), T).reshape(Cout * T, 1)
    return jnp.asarray(P), wt, bias_col


# ------------------------------ Pallas kernel ---------------------------------
def conv_same_pad_kernel(x_ref, p_ref, wt_ref, bias_ref, o_ref, xs_ref):
    """Whole ConvSamePad forward in one invocation (no grid, all VMEM).

    x_ref   : (B, Cin*T, NC)       raw input, rows = (ci, t_in), lanes = nc_in
    p_ref   : (kW, NC, NC)         lane-permutation matrices (constant)
    wt_ref  : (Cout*T, kW*Cin*T)   time-folded weights
    bias_ref: (Cout*T, 1)          bias (implicit lane broadcast)
    o_ref   : (B, Cout, T, NC)     final NCHW output (no wrapper post-ops)
    xs_ref  : (kW*Cin*T, NC)       VMEM scratch: per-batch "im2col" slab
    """
    B, CT, NC = x_ref.shape
    KW = p_ref.shape[0]
    Cout, T = o_ref.shape[1], o_ref.shape[2]

    for bi in range(B):                                   # static, tiny batch
        xb = x_ref[bi]                                    # (Cin*T, NC) aligned load
        # Build the slab: rows k = (iw, ci, t_in), lanes = nc_out.
        # Each tap's nc shift / reflect / side-interleave is one tiny MXU matmul
        # with the constant permutation matrix; stores are sublane-aligned.
        for iw in range(KW):
            xs_ref[iw * CT:(iw + 1) * CT, :] = jnp.dot(
                xb, p_ref[iw], preferred_element_type=jnp.float32)
        # One MXU contraction over k (time taps + time reflect-pad live in wt),
        # bias added via implicit (Cout*T, 1) -> (Cout*T, NC) broadcast.
        res = jnp.dot(wt_ref[...], xs_ref[...],
                      preferred_element_type=jnp.float32) + bias_ref[...]
        # rows of res are (co, t): peel sublane-aligned (T, NC) blocks straight
        # into the NCHW output.
        for co in range(Cout):
            o_ref[bi, co] = res[co * T:(co + 1) * T, :].astype(o_ref.dtype)


# ------------------------------ wrapper / glue ---------------------------------
@jax.jit
def conv_same_pad_forward(x, p, wt, bias_col):
    """Hot path: exactly one pallas_call (plus a free bitcast reshape of x)."""
    B, C, T, NC = x.shape
    KW = p.shape[0]
    CoutT, K = wt.shape
    Cout = CoutT // T
    assert K == KW * C * T

    x2 = x.reshape(B, C * T, NC)   # contiguous reshape -> bitcast, no data movement

    flops = 2 * B * (KW * (C * T) * NC * NC + CoutT * K * NC)
    bytes_accessed = 4 * (x2.size + p.size + wt.size + bias_col.size + B * CoutT * NC)

    return pl.pallas_call(
        conv_same_pad_kernel,
        out_shape=jax.ShapeDtypeStruct((B, Cout, T, NC), x.dtype),
        in_specs=[
            pl.BlockSpec(memory_space=pltpu.MemorySpace.VMEM),
            pl.BlockSpec(memory_space=pltpu.MemorySpace.VMEM),
            pl.BlockSpec(memory_space=pltpu.MemorySpace.VMEM),
            pl.BlockSpec(memory_space=pltpu.MemorySpace.VMEM),
        ],
        out_specs=pl.BlockSpec(memory_space=pltpu.MemorySpace.VMEM),
        scratch_shapes=[pltpu.VMEM((K, NC), jnp.float32)],
        cost_estimate=pl.CostEstimate(flops=flops, transcendentals=0,
                                      bytes_accessed=bytes_accessed),
    )(x2, p, wt, bias_col)


# ------------------------------ reference (pure JAX) ---------------------------
def _ref_side(inp_nchw, weight_oihw, bias, stride):
    b, c, time, hnc = inp_nchw.shape
    outC, inC, kH, kW = weight_oihw.shape
    sp = get_same_pad(h=hnc, w=time, kh=kW, kw=kH, s=stride)
    x_pad = jnp.pad(inp_nchw, ((0, 0), (0, 0),
                               (sp['left'], sp['right']),
                               (sp['top'], sp['bottom'])), mode='reflect')
    out = lax.conv_general_dilated(
        x_pad, weight_oihw, window_strides=stride, padding='VALID',
        dimension_numbers=('NCHW', 'OIHW', 'NCHW'))
    return out + bias[None, :, None, None]


def _ref_forward(x, weight, bias, stride):
    nc = x.shape[-1]
    side = nc // 2
    left = _ref_side(x[..., :side], weight, bias, stride)
    right = _ref_side(x[..., side:], weight, bias, stride)
    stacked = jnp.stack([left, right], axis=-1)
    return stacked.reshape(*stacked.shape[:-2], -1)


# ----------------------------------- main ---------------------------------------
if __name__ == "__main__":
    key = jax.random.PRNGKey(0)
    kx, kw_, kb = jax.random.split(key, 3)

    B, C, TIME, NC = 2, IN_CH, 16, 16
    x = jax.random.normal(kx, (B, C, TIME, NC), dtype=jnp.float32)

    # deterministic Conv2d-style parameters (uniform in [-1/sqrt(fan_in), 1/sqrt(fan_in)])
    fan_in = IN_CH * KERNEL_SIZE[0] * KERNEL_SIZE[1]
    bound = 1.0 / (fan_in ** 0.5)
    weight = jax.random.uniform(kw_, (OUT_CH, IN_CH, *KERNEL_SIZE),
                                minval=-bound, maxval=bound, dtype=jnp.float32)
    bias = jax.random.uniform(kb, (OUT_CH,), minval=-bound, maxval=bound,
                              dtype=jnp.float32)

    # one-time parameter folding (done at weight-load time in a real model)
    p, wt, bias_col = fold_conv_same_pad_params(weight, bias, TIME, NC, STRIDE)
    p, wt, bias_col = jax.block_until_ready((p, wt, bias_col))

    out = conv_same_pad_forward(x, p, wt, bias_col)
    out = jax.block_until_ready(out)
    assert out.shape == (B, OUT_CH, TIME, NC), out.shape

    ref = jax.block_until_ready(_ref_forward(x, weight, bias, STRIDE))
    assert jnp.allclose(out, ref, rtol=1e-4, atol=1e-4), float(jnp.abs(out - ref).max())

    print("KERNEL_OK")
</pallas_src>

<mosaic_0001>
module attributes {stable_mosaic.version = 11 : i64} {
  func.func @conv_same_pad_kernel(%arg0: memref<2x64x16xf32, #tpu.memory_space<vmem>>, %arg1: memref<3x16x16xf32, #tpu.memory_space<vmem>>, %arg2: memref<128x192xf32, #tpu.memory_space<vmem>>, %arg3: memref<128x1xf32, #tpu.memory_space<vmem>>, %arg4: memref<2x8x16x16xf32, #tpu.memory_space<vmem>>, %arg5: memref<192x16xf32, #tpu.memory_space<vmem>>) attributes {dimension_semantics = [], scalar_prefetch = 0 : i64, scratch_operands = 1 : i64, tpu.core_type = #tpu.core_type<tc>} {
    %c0 = arith.constant 0 : index
    %c0_0 = arith.constant 0 : index
    %c0_1 = arith.constant 0 : index
    %0 = vector.load %arg0[%c0, %c0_0, %c0_1] : memref<2x64x16xf32, #tpu.memory_space<vmem>>, vector<1x64x16xf32>
    %1 = vector.shape_cast %0 : vector<1x64x16xf32> to vector<64x16xf32>
    %c0_2 = arith.constant 0 : index
    %c0_3 = arith.constant 0 : index
    %c0_4 = arith.constant 0 : index
    %2 = vector.load %arg1[%c0_2, %c0_3, %c0_4] : memref<3x16x16xf32, #tpu.memory_space<vmem>>, vector<1x16x16xf32>
    %3 = vector.shape_cast %2 : vector<1x16x16xf32> to vector<16x16xf32>
    %cst = arith.constant dense<0.000000e+00> : vector<64x16xf32>
    %4 = tpu.matmul %1, %3, %cst {dimension_numbers = #tpu.dot_dimension_numbers<[1], [0], [0], [1], [0, 0, 1, 1], [], []>} : vector<64x16xf32>, vector<16x16xf32>, vector<64x16xf32> -> vector<64x16xf32>
    %c0_5 = arith.constant 0 : index
    %c0_6 = arith.constant 0 : index
    %5 = vector.load %arg5[%c0_5, %c0_6] : memref<192x16xf32, #tpu.memory_space<vmem>>, vector<64x16xf32>
    tpu.vector_store %arg5[%c0_5, %c0_6], %4 {strides = array<i32>} : memref<192x16xf32, #tpu.memory_space<vmem>>, vector<64x16xf32>,
    %c1 = arith.constant 1 : index
    %c0_7 = arith.constant 0 : index
    %c0_8 = arith.constant 0 : index
    %6 = vector.load %arg1[%c1, %c0_7, %c0_8] : memref<3x16x16xf32, #tpu.memory_space<vmem>>, vector<1x16x16xf32>
    %7 = vector.shape_cast %6 : vector<1x16x16xf32> to vector<16x16xf32>
    %cst_9 = arith.constant dense<0.000000e+00> : vector<64x16xf32>
    %8 = tpu.matmul %1, %7, %cst_9 {dimension_numbers = #tpu.dot_dimension_numbers<[1], [0], [0], [1], [0, 0, 1, 1], [], []>} : vector<64x16xf32>, vector<16x16xf32>, vector<64x16xf32> -> vector<64x16xf32>
    %c64 = arith.constant 64 : index
    %c0_10 = arith.constant 0 : index
    %9 = vector.load %arg5[%c64, %c0_10] : memref<192x16xf32, #tpu.memory_space<vmem>>, vector<64x16xf32>
    tpu.vector_store %arg5[%c64, %c0_10], %8 {strides = array<i32>} : memref<192x16xf32, #tpu.memory_space<vmem>>, vector<64x16xf32>,
    %c2 = arith.constant 2 : index
    %c0_11 = arith.constant 0 : index
    %c0_12 = arith.constant 0 : index
    %10 = vector.load %arg1[%c2, %c0_11, %c0_12] : memref<3x16x16xf32, #tpu.memory_space<vmem>>, vector<1x16x16xf32>
    %11 = vector.shape_cast %10 : vector<1x16x16xf32> to vector<16x16xf32>
    %cst_13 = arith.constant dense<0.000000e+00> : vector<64x16xf32>
    %12 = tpu.matmul %1, %11, %cst_13 {dimension_numbers = #tpu.dot_dimension_numbers<[1], [0], [0], [1], [0, 0, 1, 1], [], []>} : vector<64x16xf32>, vector<16x16xf32>, vector<64x16xf32> -> vector<64x16xf32>
    %c128 = arith.constant 128 : index
    %c0_14 = arith.constant 0 : index
    %13 = vector.load %arg5[%c128, %c0_14] : memref<192x16xf32, #tpu.memory_space<vmem>>, vector<64x16xf32>
    tpu.vector_store %arg5[%c128, %c0_14], %12 {strides = array<i32>} : memref<192x16xf32, #tpu.memory_space<vmem>>, vector<64x16xf32>,
    %c0_15 = arith.constant 0 : index
    %c0_16 = arith.constant 0 : index
    %14 = vector.load %arg2[%c0_15, %c0_16] : memref<128x192xf32, #tpu.memory_space<vmem>>, vector<128x192xf32>
    %c0_17 = arith.constant 0 : index
    %c0_18 = arith.constant 0 : index
    %15 = vector.load %arg5[%c0_17, %c0_18] : memref<192x16xf32, #tpu.memory_space<vmem>>, vector<192x16xf32>
    %cst_19 = arith.constant dense<0.000000e+00> : vector<128x16xf32>
    %16 = tpu.matmul %14, %15, %cst_19 {dimension_numbers = #tpu.dot_dimension_numbers<[1], [0], [0], [1], [0, 0, 1, 1], [], []>} : vector<128x192xf32>, vector<192x16xf32>, vector<128x16xf32> -> vector<128x16xf32>
    %c0_20 = arith.constant 0 : index
    %c0_21 = arith.constant 0 : index
    %17 = vector.load %arg3[%c0_20, %c0_21] : memref<128x1xf32, #tpu.memory_space<vmem>>, vector<128x1xf32>
    %18 = vector.broadcast %17 : vector<128x1xf32> to vector<128x16xf32>
    %19 = arith.addf %16, %18 : vector<128x16xf32>
    %20 = vector.extract_strided_slice %19 {offsets = [0, 0], sizes = [16, 16], strides = [1, 1]} : vector<128x16xf32> to vector<16x16xf32>
    %c0_22 = arith.constant 0 : index
    %c0_23 = arith.constant 0 : index
    %c0_24 = arith.constant 0 : index
    %c0_25 = arith.constant 0 : index
    %21 = vector.load %arg4[%c0_22, %c0_23, %c0_24, %c0_25] : memref<2x8x16x16xf32, #tpu.memory_space<vmem>>, vector<1x1x16x16xf32>
    %22 = vector.shape_cast %21 : vector<1x1x16x16xf32> to vector<16x16xf32>
    %23 = vector.shape_cast %20 : vector<16x16xf32> to vector<1x1x16x16xf32>
    tpu.vector_store %arg4[%c0_22, %c0_23, %c0_24, %c0_25], %23 {strides = array<i32>} : memref<2x8x16x16xf32, #tpu.memory_space<vmem>>, vector<1x1x16x16xf32>,
    %24 = vector.extract_strided_slice %19 {offsets = [16, 0], sizes = [16, 16], strides = [1, 1]} : vector<128x16xf32> to vector<16x16xf32>
    %c0_26 = arith.constant 0 : index
    %c1_27 = arith.constant 1 : index
    %c0_28 = arith.constant 0 : index
    %c0_29 = arith.constant 0 : index
    %25 = vector.load %arg4[%c0_26, %c1_27, %c0_28, %c0_29] : memref<2x8x16x16xf32, #tpu.memory_space<vmem>>, vector<1x1x16x16xf32>
    %26 = vector.shape_cast %25 : vector<1x1x16x16xf32> to vector<16x16xf32>
    %27 = vector.shape_cast %24 : vector<16x16xf32> to vector<1x1x16x16xf32>
    tpu.vector_store %arg4[%c0_26, %c1_27, %c0_28, %c0_29], %27 {strides = array<i32>} : memref<2x8x16x16xf32, #tpu.memory_space<vmem>>, vector<1x1x16x16xf32>,
    %28 = vector.extract_strided_slice %19 {offsets = [32, 0], sizes = [16, 16], strides = [1, 1]} : vector<128x16xf32> to vector<16x16xf32>
    %c0_30 = arith.constant 0 : index
    %c2_31 = arith.constant 2 : index
    %c0_32 = arith.constant 0 : index
    %c0_33 = arith.constant 0 : index
    %29 = vector.load %arg4[%c0_30, %c2_31, %c0_32, %c0_33] : memref<2x8x16x16xf32, #tpu.memory_space<vmem>>, vector<1x1x16x16xf32>
    %30 = vector.shape_cast %29 : vector<1x1x16x16xf32> to vector<16x16xf32>
    %31 = vector.shape_cast %28 : vector<16x16xf32> to vector<1x1x16x16xf32>
    tpu.vector_store %arg4[%c0_30, %c2_31, %c0_32, %c0_33], %31 {strides = array<i32>} : memref<2x8x16x16xf32, #tpu.memory_space<vmem>>, vector<1x1x16x16xf32>,
    %32 = vector.extract_strided_slice %19 {offsets = [48, 0], sizes = [16, 16], strides = [1, 1]} : vector<128x16xf32> to vector<16x16xf32>
    %c0_34 = arith.constant 0 : index
    %c3 = arith.constant 3 : index
    %c0_35 = arith.constant 0 : index
    %c0_36 = arith.constant 0 : index
    %33 = vector.load %arg4[%c0_34, %c3, %c0_35, %c0_36] : memref<2x8x16x16xf32, #tpu.memory_space<vmem>>, vector<1x1x16x16xf32>
    %34 = vector.shape_cast %33 : vector<1x1x16x16xf32> to vector<16x16xf32>
    %35 = vector.shape_cast %32 : vector<16x16xf32> to vector<1x1x16x16xf32>
    tpu.vector_store %arg4[%c0_34, %c3, %c0_35, %c0_36], %35 {strides = array<i32>} : memref<2x8x16x16xf32, #tpu.memory_space<vmem>>, vector<1x1x16x16xf32>,
    %36 = vector.extract_strided_slice %19 {offsets = [64, 0], sizes = [16, 16], strides = [1, 1]} : vector<128x16xf32> to vector<16x16xf32>
    %c0_37 = arith.constant 0 : index
    %c4 = arith.constant 4 : index
    %c0_38 = arith.constant 0 : index
    %c0_39 = arith.constant 0 : index
    %37 = vector.load %arg4[%c0_37, %c4, %c0_38, %c0_39] : memref<2x8x16x16xf32, #tpu.memory_space<vmem>>, vector<1x1x16x16xf32>
    %38 = vector.shape_cast %37 : vector<1x1x16x16xf32> to vector<16x16xf32>
    %39 = vector.shape_cast %36 : vector<16x16xf32> to vector<1x1x16x16xf32>
    tpu.vector_store %arg4[%c0_37, %c4, %c0_38, %c0_39], %39 {strides = array<i32>} : memref<2x8x16x16xf32, #tpu.memory_space<vmem>>, vector<1x1x16x16xf32>,
    %40 = vector.extract_strided_slice %19 {offsets = [80, 0], sizes = [16, 16], strides = [1, 1]} : vector<128x16xf32> to vector<16x16xf32>
    %c0_40 = arith.constant 0 : index
    %c5 = arith.constant 5 : index
    %c0_41 = arith.constant 0 : index
    %c0_42 = arith.constant 0 : index
    %41 = vector.load %arg4[%c0_40, %c5, %c0_41, %c0_42] : memref<2x8x16x16xf32, #tpu.memory_space<vmem>>, vector<1x1x16x16xf32>
    %42 = vector.shape_cast %41 : vector<1x1x16x16xf32> to vector<16x16xf32>
    %43 = vector.shape_cast %40 : vector<16x16xf32> to vector<1x1x16x16xf32>
    tpu.vector_store %arg4[%c0_40, %c5, %c0_41, %c0_42], %43 {strides = array<i32>} : memref<2x8x16x16xf32, #tpu.memory_space<vmem>>, vector<1x1x16x16xf32>,
    %44 = vector.extract_strided_slice %19 {offsets = [96, 0], sizes = [16, 16], strides = [1, 1]} : vector<128x16xf32> to vector<16x16xf32>
    %c0_43 = arith.constant 0 : index
    %c6 = arith.constant 6 : index
    %c0_44 = arith.constant 0 : index
    %c0_45 = arith.constant 0 : index
    %45 = vector.load %arg4[%c0_43, %c6, %c0_44, %c0_45] : memref<2x8x16x16xf32, #tpu.memory_space<vmem>>, vector<1x1x16x16xf32>
    %46 = vector.shape_cast %45 : vector<1x1x16x16xf32> to vector<16x16xf32>
    %47 = vector.shape_cast %44 : vector<16x16xf32> to vector<1x1x16x16xf32>
    tpu.vector_store %arg4[%c0_43, %c6, %c0_44, %c0_45], %47 {strides = array<i32>} : memref<2x8x16x16xf32, #tpu.memory_space<vmem>>, vector<1x1x16x16xf32>,
    %48 = vector.extract_strided_slice %19 {offsets = [112, 0], sizes = [16, 16], strides = [1, 1]} : vector<128x16xf32> to vector<16x16xf32>
    %c0_46 = arith.constant 0 : index
    %c7 = arith.constant 7 : index
    %c0_47 = arith.constant 0 : index
    %c0_48 = arith.constant 0 : index
    %49 = vector.load %arg4[%c0_46, %c7, %c0_47, %c0_48] : memref<2x8x16x16xf32, #tpu.memory_space<vmem>>, vector<1x1x16x16xf32>
    %50 = vector.shape_cast %49 : vector<1x1x16x16xf32> to vector<16x16xf32>
    %51 = vector.shape_cast %48 : vector<16x16xf32> to vector<1x1x16x16xf32>
    tpu.vector_store %arg4[%c0_46, %c7, %c0_47, %c0_48], %51 {strides = array<i32>} : memref<2x8x16x16xf32, #tpu.memory_space<vmem>>, vector<1x1x16x16xf32>,
    %c1_49 = arith.constant 1 : index
    %c0_50 = arith.constant 0 : index
    %c0_51 = arith.constant 0 : index
    %52 = vector.load %arg0[%c1_49, %c0_50, %c0_51] : memref<2x64x16xf32, #tpu.memory_space<vmem>>, vector<1x64x16xf32>
    %53 = vector.shape_cast %52 : vector<1x64x16xf32> to vector<64x16xf32>
    %c0_52 = arith.constant 0 : index
    %c0_53 = arith.constant 0 : index
    %c0_54 = arith.constant 0 : index
    %54 = vector.load %arg1[%c0_52, %c0_53, %c0_54] : memref<3x16x16xf32, #tpu.memory_space<vmem>>, vector<1x16x16xf32>
    %55 = vector.shape_cast %54 : vector<1x16x16xf32> to vector<16x16xf32>
    %cst_55 = arith.constant dense<0.000000e+00> : vector<64x16xf32>
    %56 = tpu.matmul %53, %55, %cst_55 {dimension_numbers = #tpu.dot_dimension_numbers<[1], [0], [0], [1], [0, 0, 1, 1], [], []>} : vector<64x16xf32>, vector<16x16xf32>, vector<64x16xf32> -> vector<64x16xf32>
    %c0_56 = arith.constant 0 : index
    %c0_57 = arith.constant 0 : index
    %57 = vector.load %arg5[%c0_56, %c0_57] : memref<192x16xf32, #tpu.memory_space<vmem>>, vector<64x16xf32>
    tpu.vector_store %arg5[%c0_56, %c0_57], %56 {strides = array<i32>} : memref<192x16xf32, #tpu.memory_space<vmem>>, vector<64x16xf32>,
    %c1_58 = arith.constant 1 : index
    %c0_59 = arith.constant 0 : index
    %c0_60 = arith.constant 0 : index
    %58 = vector.load %arg1[%c1_58, %c0_59, %c0_60] : memref<3x16x16xf32, #tpu.memory_space<vmem>>, vector<1x16x16xf32>
    %59 = vector.shape_cast %58 : vector<1x16x16xf32> to vector<16x16xf32>
    %cst_61 = arith.constant dense<0.000000e+00> : vector<64x16xf32>
    %60 = tpu.matmul %53, %59, %cst_61 {dimension_numbers = #tpu.dot_dimension_numbers<[1], [0], [0], [1], [0, 0, 1, 1], [], []>} : vector<64x16xf32>, vector<16x16xf32>, vector<64x16xf32> -> vector<64x16xf32>
    %c64_62 = arith.constant 64 : index
    %c0_63 = arith.constant 0 : index
    %61 = vector.load %arg5[%c64_62, %c0_63] : memref<192x16xf32, #tpu.memory_space<vmem>>, vector<64x16xf32>
    tpu.vector_store %arg5[%c64_62, %c0_63], %60 {strides = array<i32>} : memref<192x16xf32, #tpu.memory_space<vmem>>, vector<64x16xf32>,
    %c2_64 = arith.constant 2 : index
    %c0_65 = arith.constant 0 : index
    %c0_66 = arith.constant 0 : index
    %62 = vector.load %arg1[%c2_64, %c0_65, %c0_66] : memref<3x16x16xf32, #tpu.memory_space<vmem>>, vector<1x16x16xf32>
    %63 = vector.shape_cast %62 : vector<1x16x16xf32> to vector<16x16xf32>
    %cst_67 = arith.constant dense<0.000000e+00> : vector<64x16xf32>
    %64 = tpu.matmul %53, %63, %cst_67 {dimension_numbers = #tpu.dot_dimension_numbers<[1], [0], [0], [1], [0, 0, 1, 1], [], []>} : vector<64x16xf32>, vector<16x16xf32>, vector<64x16xf32> -> vector<64x16xf32>
    %c128_68 = arith.constant 128 : index
    %c0_69 = arith.constant 0 : index
    %65 = vector.load %arg5[%c128_68, %c0_69] : memref<192x16xf32, #tpu.memory_space<vmem>>, vector<64x16xf32>
    tpu.vector_store %arg5[%c128_68, %c0_69], %64 {strides = array<i32>} : memref<192x16xf32, #tpu.memory_space<vmem>>, vector<64x16xf32>,
    %c0_70 = arith.constant 0 : index
    %c0_71 = arith.constant 0 : index
    %66 = vector.load %arg2[%c0_70, %c0_71] : memref<128x192xf32, #tpu.memory_space<vmem>>, vector<128x192xf32>
    %c0_72 = arith.constant 0 : index
    %c0_73 = arith.constant 0 : index
    %67 = vector.load %arg5[%c0_72, %c0_73] : memref<192x16xf32, #tpu.memory_space<vmem>>, vector<192x16xf32>
    %cst_74 = arith.constant dense<0.000000e+00> : vector<128x16xf32>
    %68 = tpu.matmul %66, %67, %cst_74 {dimension_numbers = #tpu.dot_dimension_numbers<[1], [0], [0], [1], [0, 0, 1, 1], [], []>} : vector<128x192xf32>, vector<192x16xf32>, vector<128x16xf32> -> vector<128x16xf32>
    %c0_75 = arith.constant 0 : index
    %c0_76 = arith.constant 0 : index
    %69 = vector.load %arg3[%c0_75, %c0_76] : memref<128x1xf32, #tpu.memory_space<vmem>>, vector<128x1xf32>
    %70 = vector.broadcast %69 : vector<128x1xf32> to vector<128x16xf32>
    %71 = arith.addf %68, %70 : vector<128x16xf32>
    %72 = vector.extract_strided_slice %71 {offsets = [0, 0], sizes = [16, 16], strides = [1, 1]} : vector<128x16xf32> to vector<16x16xf32>
    %c1_77 = arith.constant 1 : index
    %c0_78 = arith.constant 0 : index
    %c0_79 = arith.constant 0 : index
    %c0_80 = arith.constant 0 : index
    %73 = vector.load %arg4[%c1_77, %c0_78, %c0_79, %c0_80] : memref<2x8x16x16xf32, #tpu.memory_space<vmem>>, vector<1x1x16x16xf32>
    %74 = vector.shape_cast %73 : vector<1x1x16x16xf32> to vector<16x16xf32>
    %75 = vector.shape_cast %72 : vector<16x16xf32> to vector<1x1x16x16xf32>
    tpu.vector_store %arg4[%c1_77, %c0_78, %c0_79, %c0_80], %75 {strides = array<i32>} : memref<2x8x16x16xf32, #tpu.memory_space<vmem>>, vector<1x1x16x16xf32>,
    %76 = vector.extract_strided_slice %71 {offsets = [16, 0], sizes = [16, 16], strides = [1, 1]} : vector<128x16xf32> to vector<16x16xf32>
    %c1_81 = arith.constant 1 : index
    %c1_82 = arith.constant 1 : index
    %c0_83 = arith.constant 0 : index
    %c0_84 = arith.constant 0 : index
    %77 = vector.load %arg4[%c1_81, %c1_82, %c0_83, %c0_84] : memref<2x8x16x16xf32, #tpu.memory_space<vmem>>, vector<1x1x16x16xf32>
    %78 = vector.shape_cast %77 : vector<1x1x16x16xf32> to vector<16x16xf32>
    %79 = vector.shape_cast %76 : vector<16x16xf32> to vector<1x1x16x16xf32>
    tpu.vector_store %arg4[%c1_81, %c1_82, %c0_83, %c0_84], %79 {strides = array<i32>} : memref<2x8x16x16xf32, #tpu.memory_space<vmem>>, vector<1x1x16x16xf32>,
    %80 = vector.extract_strided_slice %71 {offsets = [32, 0], sizes = [16, 16], strides = [1, 1]} : vector<128x16xf32> to vector<16x16xf32>
    %c1_85 = arith.constant 1 : index
    %c2_86 = arith.constant 2 : index
    %c0_87 = arith.constant 0 : index
    %c0_88 = arith.constant 0 : index
    %81 = vector.load %arg4[%c1_85, %c2_86, %c0_87, %c0_88] : memref<2x8x16x16xf32, #tpu.memory_space<vmem>>, vector<1x1x16x16xf32>
    %82 = vector.shape_cast %81 : vector<1x1x16x16xf32> to vector<16x16xf32>
    %83 = vector.shape_cast %80 : vector<16x16xf32> to vector<1x1x16x16xf32>
    tpu.vector_store %arg4[%c1_85, %c2_86, %c0_87, %c0_88], %83 {strides = array<i32>} : memref<2x8x16x16xf32, #tpu.memory_space<vmem>>, vector<1x1x16x16xf32>,
    %84 = vector.extract_strided_slice %71 {offsets = [48, 0], sizes = [16, 16], strides = [1, 1]} : vector<128x16xf32> to vector<16x16xf32>
    %c1_89 = arith.constant 1 : index
    %c3_90 = arith.constant 3 : index
    %c0_91 = arith.constant 0 : index
    %c0_92 = arith.constant 0 : index
    %85 = vector.load %arg4[%c1_89, %c3_90, %c0_91, %c0_92] : memref<2x8x16x16xf32, #tpu.memory_space<vmem>>, vector<1x1x16x16xf32>
    %86 = vector.shape_cast %85 : vector<1x1x16x16xf32> to vector<16x16xf32>
    %87 = vector.shape_cast %84 : vector<16x16xf32> to vector<1x1x16x16xf32>
    tpu.vector_store %arg4[%c1_89, %c3_90, %c0_91, %c0_92], %87 {strides = array<i32>} : memref<2x8x16x16xf32, #tpu.memory_space<vmem>>, vector<1x1x16x16xf32>,
    %88 = vector.extract_strided_slice %71 {offsets = [64, 0], sizes = [16, 16], strides = [1, 1]} : vector<128x16xf32> to vector<16x16xf32>
    %c1_93 = arith.constant 1 : index
    %c4_94 = arith.constant 4 : index
    %c0_95 = arith.constant 0 : index
    %c0_96 = arith.constant 0 : index
    %89 = vector.load %arg4[%c1_93, %c4_94, %c0_95, %c0_96] : memref<2x8x16x16xf32, #tpu.memory_space<vmem>>, vector<1x1x16x16xf32>
    %90 = vector.shape_cast %89 : vector<1x1x16x16xf32> to vector<16x16xf32>
    %91 = vector.shape_cast %88 : vector<16x16xf32> to vector<1x1x16x16xf32>
    tpu.vector_store %arg4[%c1_93, %c4_94, %c0_95, %c0_96], %91 {strides = array<i32>} : memref<2x8x16x16xf32, #tpu.memory_space<vmem>>, vector<1x1x16x16xf32>,
    %92 = vector.extract_strided_slice %71 {offsets = [80, 0], sizes = [16, 16], strides = [1, 1]} : vector<128x16xf32> to vector<16x16xf32>
    %c1_97 = arith.constant 1 : index
    %c5_98 = arith.constant 5 : index
    %c0_99 = arith.constant 0 : index
    %c0_100 = arith.constant 0 : index
    %93 = vector.load %arg4[%c1_97, %c5_98, %c0_99, %c0_100] : memref<2x8x16x16xf32, #tpu.memory_space<vmem>>, vector<1x1x16x16xf32>
    %94 = vector.shape_cast %93 : vector<1x1x16x16xf32> to vector<16x16xf32>
    %95 = vector.shape_cast %92 : vector<16x16xf32> to vector<1x1x16x16xf32>
    tpu.vector_store %arg4[%c1_97, %c5_98, %c0_99, %c0_100], %95 {strides = array<i32>} : memref<2x8x16x16xf32, #tpu.memory_space<vmem>>, vector<1x1x16x16xf32>,
    %96 = vector.extract_strided_slice %71 {offsets = [96, 0], sizes = [16, 16], strides = [1, 1]} : vector<128x16xf32> to vector<16x16xf32>
    %c1_101 = arith.constant 1 : index
    %c6_102 = arith.constant 6 : index
    %c0_103 = arith.constant 0 : index
    %c0_104 = arith.constant 0 : index
    %97 = vector.load %arg4[%c1_101, %c6_102, %c0_103, %c0_104] : memref<2x8x16x16xf32, #tpu.memory_space<vmem>>, vector<1x1x16x16xf32>
    %98 = vector.shape_cast %97 : vector<1x1x16x16xf32> to vector<16x16xf32>
    %99 = vector.shape_cast %96 : vector<16x16xf32> to vector<1x1x16x16xf32>
    tpu.vector_store %arg4[%c1_101, %c6_102, %c0_103, %c0_104], %99 {strides = array<i32>} : memref<2x8x16x16xf32, #tpu.memory_space<vmem>>, vector<1x1x16x16xf32>,
    %100 = vector.extract_strided_slice %71 {offsets = [112, 0], sizes = [16, 16], strides = [1, 1]} : vector<128x16xf32> to vector<16x16xf32>
    %c1_105 = arith.constant 1 : index
    %c7_106 = arith.constant 7 : index
    %c0_107 = arith.constant 0 : index
    %c0_108 = arith.constant 0 : index
    %101 = vector.load %arg4[%c1_105, %c7_106, %c0_107, %c0_108] : memref<2x8x16x16xf32, #tpu.memory_space<vmem>>, vector<1x1x16x16xf32>
    %102 = vector.shape_cast %101 : vector<1x1x16x16xf32> to vector<16x16xf32>
    %103 = vector.shape_cast %100 : vector<16x16xf32> to vector<1x1x16x16xf32>
    tpu.vector_store %arg4[%c1_105, %c7_106, %c0_107, %c0_108], %103 {strides = array<i32>} : memref<2x8x16x16xf32, #tpu.memory_space<vmem>>, vector<1x1x16x16xf32>,
    return
  }
}

</mosaic_0001>

<llo_original>
// kernel: conv_same_pad_forward.1
$region0: #{conv_same_pad_forward.1}
  #allocation0 [shape = 'u32[]', space=smem, size = 0x4, offset = 0x4, fixed_abs, tag = 'smem constant byte address 0x4 - core index']
  #allocation1 [shape = 'u32[144,128]{1,0:T(1,128)}', space=vmem, size = 0x12000, scoped, tag = 'internal scratch']
  #allocation2 [shape = 'f32[192,16]{1,0:T(8,128)}', space=vmem, size = 0x18000, scoped, tag = 'scratch operand']
  %s0 = inlined_call_operand.vmem [shape: f32[2,64,16], index: 0, kind: input, shape index: {}]
  %s1 = inlined_call_operand.vmem [shape: f32[3,16,16], index: 1, kind: input, shape index: {}]
  %s2 = inlined_call_operand.vmem [shape: f32[128,192], index: 2, kind: input, shape index: {}]
  %s3 = inlined_call_operand.vmem [shape: f32[128,1], index: 3, kind: input, shape index: {}]
  %s4 = inlined_call_operand.hbm [shape: f32[2,8,16,16], index: 4, kind: output, shape index: {}]
  %s5 = sld [smem:[#allocation0]]
  $region26: #{conv_same_pad_forward.1} parent=0
    _
  %s7 = ssub.s32 1, %s5
  %s8 = scalar_select 0, %s7, %s5
  $region1: #{conv_same_pad_forward.1} parent=0
    #allocation3 [shape = 'u8[131072]{0}', space=vmem, size = 0x20000, scoped, tag = 'output window, operand 0, single buffered']
    #allocation4 [shape = 's32[1]{0}', space=sflag, size = 0x4, scoped, tag = 'scoped memory for conv_same_pad_forward.1']
    %9 = vsyncpa [#allocation4], 0
    // Predicated region
    $region2: #{conv_same_pad_forward.1} parent=1 // pred_check
      _
    $region3: #{conv_same_pad_forward.1} parent=1 // pred_check_branch
      %11 = sbr.rel (0) target = $region5
    $region4: #{conv_same_pad_forward.1} parent=1 // pred_region
      _
    $region5: #{conv_same_pad_forward.1} parent=1 // pred_fallthru
      _
    // Predicated region
    $region6: #{conv_same_pad_forward.1} parent=1 // pred_check
      _
    $region7: #{conv_same_pad_forward.1} parent=1 // pred_check_branch
      %13 = sbr.rel (0) target = $region9
    $region8: #{conv_same_pad_forward.1} parent=1 // pred_region
      _
    $region9: #{conv_same_pad_forward.1} parent=1 // pred_fallthru
      _
    // Predicated region
    $region10: #{conv_same_pad_forward.1} parent=1 // pred_check
      _
    $region11: #{conv_same_pad_forward.1} parent=1 // pred_check_branch
      %15 = sbr.rel (0) target = $region13
    $region12: #{conv_same_pad_forward.1} parent=1 // pred_region
      _
    $region13: #{conv_same_pad_forward.1} parent=1 // pred_fallthru
      _
    // Predicated region
    $region14: #{conv_same_pad_forward.1} parent=1 // pred_check
      _
    $region15: #{conv_same_pad_forward.1} parent=1 // pred_check_branch
      %17 = sbr.rel (0) target = $region17
    $region16: #{conv_same_pad_forward.1} parent=1 // pred_region
      _
    $region17: #{conv_same_pad_forward.1} parent=1 // pred_fallthru
      _
    %v18 = vld [vmem:[%s0] sm:$0xff]
    %v19 = vld [vmem:[%s0 + $0x8] sm:$0xff]
    %v20 = vld [vmem:[%s0 + $0x10] sm:$0xff]
    %v21 = vld [vmem:[%s0 + $0x18] sm:$0xff]
    %v22 = vld [vmem:[%s0 + $0x20] sm:$0xff]
    %v23 = vld [vmem:[%s0 + $0x28] sm:$0xff]
    %v24 = vld [vmem:[%s0 + $0x30] sm:$0xff]
    %v25 = vld [vmem:[%s0 + $0x38] sm:$0xff]
    %v26 = vld [vmem:[%s1] sm:$0xff]
    %v27 = vld [vmem:[%s1 + $0x8] sm:$0xff]
    %vm28 = vcmask 130048
    %v30 = vsel %vm28, %v18, 0
    %v33 = vsel %vm28, %v19, 0
    %v36 = vsel %vm28, %v20, 0
    %v39 = vsel %vm28, %v21, 0
    %v42 = vsel %vm28, %v22, 0
    %v45 = vsel %vm28, %v23, 0
    %v48 = vsel %vm28, %v24, 0
    %v51 = vsel %vm28, %v25, 0
    %53 = vmatprep.subr.mxu0 0.0
    %54 = vmatpush1.msra.mxu0 %v26
    %55 = vmatprep.subr.mxu0 0.0
    %56 = vmatpush1.msra.mxu0 %v27
    %57 = vmatprep.subr.mxu0 0.0
    %58 = vmatpush1.msra.mxu0 0.0
    %59 = vmatprep.subr.mxu0 0.0
    %60 = vmatpush1.msra.mxu0 0.0
    %61 = vmatprep.subr.mxu0 0.0
    %62 = vmatpush1.msra.mxu0 0.0
    %63 = vmatprep.subr.mxu0 0.0
    %64 = vmatpush1.msra.mxu0 0.0
    %65 = vmatprep.subr.mxu0 0.0
    %66 = vmatpush1.msra.mxu0 0.0
    %67 = vmatprep.subr.mxu0 0.0
    %68 = vmatpush1.msra.mxu0 0.0
    %69 = vmatprep.subr.mxu0 0.0
    %70 = vmatpush1.msra.mxu0 0.0
    %71 = vmatprep.subr.mxu0 0.0
    %72 = vmatpush1.msra.mxu0 0.0
    %73 = vmatprep.subr.mxu0 0.0
    %74 = vmatpush1.msra.mxu0 0.0
    %75 = vmatprep.subr.mxu0 0.0
    %76 = vmatpush1.msra.mxu0 0.0
    %77 = vmatprep.subr.mxu0 0.0
    %78 = vmatpush1.msra.mxu0 0.0
    %79 = vmatprep.subr.mxu0 0.0
    %80 = vmatpush1.msra.mxu0 0.0
    %81 = vmatprep.subr.mxu0 0.0
    %82 = vmatpush1.msra.mxu0 0.0
    %83 = vmatprep.subr.mxu0 0.0
    %84 = vmatpush1.msra.mxu0 0.0
    %85 = vmatprep.subr.mxu0 0.0
    %86 = vmatpush1.msra.mxu0 0.0
    %87 = vmatprep.subr.mxu0 0.0
    %88 = vmatpush1.msra.mxu0 0.0
    %89 = vmatprep.subr.mxu0 0.0
    %90 = vmatpush1.msra.mxu0 0.0
    %91 = vmatprep.subr.mxu0 0.0
    %92 = vmatpush1.msra.mxu0 0.0
    %93 = vmatprep.subr.mxu0 0.0
    %94 = vmatpush1.msra.mxu0 0.0
    %95 = vmatprep.subr.mxu0 0.0
    %96 = vmatpush1.msra.mxu0 0.0
    %97 = vmatprep.subr.mxu0 0.0
    %98 = vmatpush1.msra.mxu0 0.0
    %99 = vmatprep.subr.mxu0 0.0
    %100 = vmatpush1.msra.mxu0 0.0
    %101 = vmatprep.subr.mxu0 0.0
    %102 = vmatpush1.msra.mxu0 0.0
    %103 = vmatprep.subr.mxu0 0.0
    %104 = vmatpush1.msra.mxu0 0.0
    %105 = vmatprep.subr.mxu0 0.0
    %106 = vmatpush1.msra.mxu0 0.0
    %107 = vmatprep.subr.mxu0 0.0
    %108 = vmatpush1.msra.mxu0 0.0
    %109 = vmatprep.subr.mxu0 0.0
    %110 = vmatpush1.msra.mxu0 0.0
    %111 = vmatprep.subr.mxu0 0.0
    %112 = vmatpush1.msra.mxu0 0.0
    %113 = vmatprep.subr.mxu0 0.0
    %114 = vmatpush1.msra.mxu0 0.0
    %115 = vmatprep.subr.mxu0 0.0
    %116 = vmatpush1.msra.mxu0 0.0
    %117 = vmatprep.mubr.f32.mxu0 0.0
    %118 = vmatmul.mubr.f32.gmra.mrb[0].mxu0 %v30
    %v119 = vpop.f32.mrb[0].mxu0
    %v120 = vadd.f32 0.0, %v119
    %v121 = vpop.f32.mrb[0].mxu0
    %122 = vmatprep.mubr.f32.mxu0 0.0
    %123 = vmatmul.mubr.f32.gmra.mrb[0].mxu0 %v33
    %v124 = vpop.f32.mrb[0].mxu0
    %v125 = vadd.f32 0.0, %v124
    %v126 = vpop.f32.mrb[0].mxu0
    %127 = vmatprep.mubr.f32.mxu0 0.0
    %128 = vmatmul.mubr.f32.gmra.mrb[0].mxu0 %v36
    %v129 = vpop.f32.mrb[0].mxu0
    %v130 = vadd.f32 0.0, %v129
    %v131 = vpop.f32.mrb[0].mxu0
    %132 = vmatprep.mubr.f32.mxu0 0.0
    %133 = vmatmul.mubr.f32.gmra.mrb[0].mxu0 %v39
    %v134 = vpop.f32.mrb[0].mxu0
    %v135 = vadd.f32 0.0, %v134
    %v136 = vpop.f32.mrb[0].mxu0
    %137 = vmatprep.mubr.f32.mxu0 0.0
    %138 = vmatmul.mubr.f32.gmra.mrb[0].mxu0 %v42
    %v139 = vpop.f32.mrb[0].mxu0
    %v140 = vadd.f32 0.0, %v139
    %v141 = vpop.f32.mrb[0].mxu0
    %142 = vmatprep.mubr.f32.mxu0 0.0
    %143 = vmatmul.mubr.f32.gmra.mrb[0].mxu0 %v45
    %v144 = vpop.f32.mrb[0].mxu0
    %v145 = vadd.f32 0.0, %v144
    %v146 = vpop.f32.mrb[0].mxu0
    %147 = vmatprep.mubr.f32.mxu0 0.0
    %148 = vmatmul.mubr.f32.gmra.mrb[0].mxu0 %v48
    %v149 = vpop.f32.mrb[0].mxu0
    %v150 = vadd.f32 0.0, %v149
    %v151 = vpop.f32.mrb[0].mxu0
    %152 = vmatprep.mubr.f32.mxu0 0.0
    %153 = vmatmul.mubr.f32.gmra.mrb[0].mxu0 %v51
    %v154 = vpop.f32.mrb[0].mxu0
    %v155 = vadd.f32 0.0, %v154
    %v156 = vpop.f32.mrb[0].mxu0
    %157 = vdwg.mxu0
    %158 = vst.msk [vmem:[#allocation2] sm:$0xff] %vm28, %v120
    %159 = vst.msk [vmem:[#allocation2 + $0x8] sm:$0xff] %vm28, %v125
    %160 = vst.msk [vmem:[#allocation2 + $0x10] sm:$0xff] %vm28, %v130
    %161 = vst.msk [vmem:[#allocation2 + $0x18] sm:$0xff] %vm28, %v135
    %162 = vst.msk [vmem:[#allocation2 + $0x20] sm:$0xff] %vm28, %v140
    %163 = vst.msk [vmem:[#allocation2 + $0x28] sm:$0xff] %vm28, %v145
    %164 = vst.msk [vmem:[#allocation2 + $0x30] sm:$0xff] %vm28, %v150
    %165 = vst.msk [vmem:[#allocation2 + $0x38] sm:$0xff] %vm28, %v155
    %s166 = scalar_lea.vmem %s1, 16
    %v167 = vld [vmem:[%s166] sm:$0xff]
    %v168 = vld [vmem:[%s166 + $0x8] sm:$0xff]
    %169 = vmatprep.subr.mxu0 0.0
    %170 = vmatpush1.msra.mxu0 %v167
    %171 = vmatprep.subr.mxu0 0.0
    %172 = vmatpush1.msra.mxu0 %v168
    %173 = vmatprep.subr.mxu0 0.0
    %174 = vmatpush1.msra.mxu0 0.0
    %175 = vmatprep.subr.mxu0 0.0
    %176 = vmatpush1.msra.mxu0 0.0
    %177 = vmatprep.subr.mxu0 0.0
    %178 = vmatpush1.msra.mxu0 0.0
    %179 = vmatprep.subr.mxu0 0.0
    %180 = vmatpush1.msra.mxu0 0.0
    %181 = vmatprep.subr.mxu0 0.0
    %182 = vmatpush1.msra.mxu0 0.0
    %183 = vmatprep.subr.mxu0 0.0
    %184 = vmatpush1.msra.mxu0 0.0
    %185 = vmatprep.subr.mxu0 0.0
    %186 = vmatpush1.msra.mxu0 0.0
    %187 = vmatprep.subr.mxu0 0.0
    %188 = vmatpush1.msra.mxu0 0.0
    %189 = vmatprep.subr.mxu0 0.0
    %190 = vmatpush1.msra.mxu0 0.0
    %191 = vmatprep.subr.mxu0 0.0
    %192 = vmatpush1.msra.mxu0 0.0
    %193 = vmatprep.subr.mxu0 0.0
    %194 = vmatpush1.msra.mxu0 0.0
    %195 = vmatprep.subr.mxu0 0.0
    %196 = vmatpush1.msra.mxu0 0.0
    %197 = vmatprep.subr.mxu0 0.0
    %198 = vmatpush1.msra.mxu0 0.0
    %199 = vmatprep.subr.mxu0 0.0
    %200 = vmatpush1.msra.mxu0 0.0
    %201 = vmatprep.subr.mxu0 0.0
    %202 = vmatpush1.msra.mxu0 0.0
    %203 = vmatprep.subr.mxu0 0.0
    %204 = vmatpush1.msra.mxu0 0.0
    %205 = vmatprep.subr.mxu0 0.0
    %206 = vmatpush1.msra.mxu0 0.0
    %207 = vmatprep.subr.mxu0 0.0
    %208 = vmatpush1.msra.mxu0 0.0
    %209 = vmatprep.subr.mxu0 0.0
    %210 = vmatpush1.msra.mxu0 0.0
    %211 = vmatprep.subr.mxu0 0.0
    %212 = vmatpush1.msra.mxu0 0.0
    %213 = vmatprep.subr.mxu0 0.0
    %214 = vmatpush1.msra.mxu0 0.0
    %215 = vmatprep.subr.mxu0 0.0
    %216 = vmatpush1.msra.mxu0 0.0
    %217 = vmatprep.subr.mxu0 0.0
    %218 = vmatpush1.msra.mxu0 0.0
    %219 = vmatprep.subr.mxu0 0.0
    %220 = vmatpush1.msra.mxu0 0.0
    %221 = vmatprep.subr.mxu0 0.0
    %222 = vmatpush1.msra.mxu0 0.0
    %223 = vmatprep.subr.mxu0 0.0
    %224 = vmatpush1.msra.mxu0 0.0
    %225 = vmatprep.subr.mxu0 0.0
    %226 = vmatpush1.msra.mxu0 0.0
    %227 = vmatprep.subr.mxu0 0.0
    %228 = vmatpush1.msra.mxu0 0.0
    %229 = vmatprep.subr.mxu0 0.0
    %230 = vmatpush1.msra.mxu0 0.0
    %231 = vmatprep.subr.mxu0 0.0
    %232 = vmatpush1.msra.mxu0 0.0
    %233 = vmatprep.mubr.f32.mxu0 0.0
    %234 = vmatmul.mubr.f32.gmra.mrb[0].mxu0 %v30
    %v235 = vpop.f32.mrb[0].mxu0
    %v236 = vadd.f32 0.0, %v235
    %v237 = vpop.f32.mrb[0].mxu0
    %238 = vmatprep.mubr.f32.mxu0 0.0
    %239 = vmatmul.mubr.f32.gmra.mrb[0].mxu0 %v33
    %v240 = vpop.f32.mrb[0].mxu0
    %v241 = vadd.f32 0.0, %v240
    %v242 = vpop.f32.mrb[0].mxu0
    %243 = vmatprep.mubr.f32.mxu0 0.0
    %244 = vmatmul.mubr.f32.gmra.mrb[0].mxu0 %v36
    %v245 = vpop.f32.mrb[0].mxu0
    %v246 = vadd.f32 0.0, %v245
    %v247 = vpop.f32.mrb[0].mxu0
    %248 = vmatprep.mubr.f32.mxu0 0.0
    %249 = vmatmul.mubr.f32.gmra.mrb[0].mxu0 %v39
    %v250 = vpop.f32.mrb[0].mxu0
    %v251 = vadd.f32 0.0, %v250
    %v252 = vpop.f32.mrb[0].mxu0
    %253 = vmatprep.mubr.f32.mxu0 0.0
    %254 = vmatmul.mubr.f32.gmra.mrb[0].mxu0 %v42
    %v255 = vpop.f32.mrb[0].mxu0
    %v256 = vadd.f32 0.0, %v255
    %v257 = vpop.f32.mrb[0].mxu0
    %258 = vmatprep.mubr.f32.mxu0 0.0
    %259 = vmatmul.mubr.f32.gmra.mrb[0].mxu0 %v45
    %v260 = vpop.f32.mrb[0].mxu0
    %v261 = vadd.f32 0.0, %v260
    %v262 = vpop.f32.mrb[0].mxu0
    %263 = vmatprep.mubr.f32.mxu0 0.0
    %264 = vmatmul.mubr.f32.gmra.mrb[0].mxu0 %v48
    %v265 = vpop.f32.mrb[0].mxu0
    %v266 = vadd.f32 0.0, %v265
    %v267 = vpop.f32.mrb[0].mxu0
    %268 = vmatprep.mubr.f32.mxu0 0.0
    %269 = vmatmul.mubr.f32.gmra.mrb[0].mxu0 %v51
    %v270 = vpop.f32.mrb[0].mxu0
    %v271 = vadd.f32 0.0, %v270
    %v272 = vpop.f32.mrb[0].mxu0
    %273 = vdwg.mxu0
    %274 = vst.msk [vmem:[#allocation2 + $0x40] sm:$0xff] %vm28, %v236
    %275 = vst.msk [vmem:[#allocation2 + $0x48] sm:$0xff] %vm28, %v241
    %276 = vst.msk [vmem:[#allocation2 + $0x50] sm:$0xff] %vm28, %v246
    %277 = vst.msk [vmem:[#allocation2 + $0x58] sm:$0xff] %vm28, %v251
    %278 = vst.msk [vmem:[#allocation2 + $0x60] sm:$0xff] %vm28, %v256
    %279 = vst.msk [vmem:[#allocation2 + $0x68] sm:$0xff] %vm28, %v261
    %280 = vst.msk [vmem:[#allocation2 + $0x70] sm:$0xff] %vm28, %v266
    %281 = vst.msk [vmem:[#allocation2 + $0x78] sm:$0xff] %vm28, %v271
    %s282 = scalar_lea.vmem %s1, 32
    %v283 = vld [vmem:[%s282] sm:$0xff]
    %v284 = vld [vmem:[%s282 + $0x8] sm:$0xff]
    %285 = vmatprep.subr.mxu0 0.0
    %286 = vmatpush1.msra.mxu0 %v283
    %287 = vmatprep.subr.mxu0 0.0
    %288 = vmatpush1.msra.mxu0 %v284
    %289 = vmatprep.subr.mxu0 0.0
    %290 = vmatpush1.msra.mxu0 0.0
    %291 = vmatprep.subr.mxu0 0.0
    %292 = vmatpush1.msra.mxu0 0.0
    %293 = vmatprep.subr.mxu0 0.0
    %294 = vmatpush1.msra.mxu0 0.0
    %295 = vmatprep.subr.mxu0 0.0
    %296 = vmatpush1.msra.mxu0 0.0
    %297 = vmatprep.subr.mxu0 0.0
    %298 = vmatpush1.msra.mxu0 0.0
    %299 = vmatprep.subr.mxu0 0.0
    %300 = vmatpush1.msra.mxu0 0.0
    %301 = vmatprep.subr.mxu0 0.0
    %302 = vmatpush1.msra.mxu0 0.0
    %303 = vmatprep.subr.mxu0 0.0
    %304 = vmatpush1.msra.mxu0 0.0
    %305 = vmatprep.subr.mxu0 0.0
    %306 = vmatpush1.msra.mxu0 0.0
    %307 = vmatprep.subr.mxu0 0.0
    %308 = vmatpush1.msra.mxu0 0.0
    %309 = vmatprep.subr.mxu0 0.0
    %310 = vmatpush1.msra.mxu0 0.0
    %311 = vmatprep.subr.mxu0 0.0
    %312 = vmatpush1.msra.mxu0 0.0
    %313 = vmatprep.subr.mxu0 0.0
    %314 = vmatpush1.msra.mxu0 0.0
    %315 = vmatprep.subr.mxu0 0.0
    %316 = vmatpush1.msra.mxu0 0.0
    %317 = vmatprep.subr.mxu0 0.0
    %318 = vmatpush1.msra.mxu0 0.0
    %319 = vmatprep.subr.mxu0 0.0
    %320 = vmatpush1.msra.mxu0 0.0
    %321 = vmatprep.subr.mxu0 0.0
    %322 = vmatpush1.msra.mxu0 0.0
    %323 = vmatprep.subr.mxu0 0.0
    %324 = vmatpush1.msra.mxu0 0.0
    %325 = vmatprep.subr.mxu0 0.0
    %326 = vmatpush1.msra.mxu0 0.0
    %327 = vmatprep.subr.mxu0 0.0
    %328 = vmatpush1.msra.mxu0 0.0
    %329 = vmatprep.subr.mxu0 0.0
    %330 = vmatpush1.msra.mxu0 0.0
    %331 = vmatprep.subr.mxu0 0.0
    %332 = vmatpush1.msra.mxu0 0.0
    %333 = vmatprep.subr.mxu0 0.0
    %334 = vmatpush1.msra.mxu0 0.0
    %335 = vmatprep.subr.mxu0 0.0
    %336 = vmatpush1.msra.mxu0 0.0
    %337 = vmatprep.subr.mxu0 0.0
    %338 = vmatpush1.msra.mxu0 0.0
    %339 = vmatprep.subr.mxu0 0.0
    %340 = vmatpush1.msra.mxu0 0.0
    %341 = vmatprep.subr.mxu0 0.0
    %342 = vmatpush1.msra.mxu0 0.0
    %343 = vmatprep.subr.mxu0 0.0
    %344 = vmatpush1.msra.mxu0 0.0
    %345 = vmatprep.subr.mxu0 0.0
    %346 = vmatpush1.msra.mxu0 0.0
    %347 = vmatprep.subr.mxu0 0.0
    %348 = vmatpush1.msra.mxu0 0.0
    %349 = vmatprep.mubr.f32.mxu0 0.0
    %350 = vmatmul.mubr.f32.gmra.mrb[0].mxu0 %v30
    %v351 = vpop.f32.mrb[0].mxu0
    %v352 = vadd.f32 0.0, %v351
    %v353 = vpop.f32.mrb[0].mxu0
    %354 = vmatprep.mubr.f32.mxu0 0.0
    %355 = vmatmul.mubr.f32.gmra.mrb[0].mxu0 %v33
    %v356 = vpop.f32.mrb[0].mxu0
    %v357 = vadd.f32 0.0, %v356
    %v358 = vpop.f32.mrb[0].mxu0
    %359 = vmatprep.mubr.f32.mxu0 0.0
    %360 = vmatmul.mubr.f32.gmra.mrb[0].mxu0 %v36
    %v361 = vpop.f32.mrb[0].mxu0
    %v362 = vadd.f32 0.0, %v361
    %v363 = vpop.f32.mrb[0].mxu0
    %364 = vmatprep.mubr.f32.mxu0 0.0
    %365 = vmatmul.mubr.f32.gmra.mrb[0].mxu0 %v39
    %v366 = vpop.f32.mrb[0].mxu0
    %v367 = vadd.f32 0.0, %v366
    %v368 = vpop.f32.mrb[0].mxu0
    %369 = vmatprep.mubr.f32.mxu0 0.0
    %370 = vmatmul.mubr.f32.gmra.mrb[0].mxu0 %v42
    %v371 = vpop.f32.mrb[0].mxu0
    %v372 = vadd.f32 0.0, %v371
    %v373 = vpop.f32.mrb[0].mxu0
    %374 = vmatprep.mubr.f32.mxu0 0.0
    %375 = vmatmul.mubr.f32.gmra.mrb[0].mxu0 %v45
    %v376 = vpop.f32.mrb[0].mxu0
    %v377 = vadd.f32 0.0, %v376
    %v378 = vpop.f32.mrb[0].mxu0
    %379 = vmatprep.mubr.f32.mxu0 0.0
    %380 = vmatmul.mubr.f32.gmra.mrb[0].mxu0 %v48
    %v381 = vpop.f32.mrb[0].mxu0
    %v382 = vadd.f32 0.0, %v381
    %v383 = vpop.f32.mrb[0].mxu0
    %384 = vmatprep.mubr.f32.mxu0 0.0
    %385 = vmatmul.mubr.f32.gmra.mrb[0].mxu0 %v51
    %v386 = vpop.f32.mrb[0].mxu0
    %v387 = vadd.f32 0.0, %v386
    %v388 = vpop.f32.mrb[0].mxu0
    %389 = vdwg.mxu0
    %390 = vst.msk [vmem:[#allocation2 + $0x80] sm:$0xff] %vm28, %v352
    %391 = vst.msk [vmem:[#allocation2 + $0x88] sm:$0xff] %vm28, %v357
    %392 = vst.msk [vmem:[#allocation2 + $0x90] sm:$0xff] %vm28, %v362
    %393 = vst.msk [vmem:[#allocation2 + $0x98] sm:$0xff] %vm28, %v367
    %394 = vst.msk [vmem:[#allocation2 + $0xa0] sm:$0xff] %vm28, %v372
    %395 = vst.msk [vmem:[#allocation2 + $0xa8] sm:$0xff] %vm28, %v377
    %396 = vst.msk [vmem:[#allocation2 + $0xb0] sm:$0xff] %vm28, %v382
    %397 = vst.msk [vmem:[#allocation2 + $0xb8] sm:$0xff] %vm28, %v387
    %v398 = vld [vmem:[%s2] sm:$0xff]
    %v399 = vld [vmem:[%s2 + $0x8] sm:$0xff]
    %v400 = vld [vmem:[%s2 + $0x10] sm:$0xff]
    %v401 = vld [vmem:[%s2 + $0x18] sm:$0xff]
    %v402 = vld [vmem:[%s2 + $0x20] sm:$0xff]
    %v403 = vld [vmem:[%s2 + $0x28] sm:$0xff]
    %v404 = vld [vmem:[%s2 + $0x30] sm:$0xff]
    %v405 = vld [vmem:[%s2 + $0x38] sm:$0xff]
    %v406 = vld [vmem:[%s2 + $0x40] sm:$0xff]
    %v407 = vld [vmem:[%s2 + $0x48] sm:$0xff]
    %v408 = vld [vmem:[%s2 + $0x50] sm:$0xff]
    %v409 = vld [vmem:[%s2 + $0x58] sm:$0xff]
    %v410 = vld [vmem:[%s2 + $0x60] sm:$0xff]
    %v411 = vld [vmem:[%s2 + $0x68] sm:$0xff]
    %v412 = vld [vmem:[%s2 + $0x70] sm:$0xff]
    %v413 = vld [vmem:[%s2 + $0x78] sm:$0xff]
    %v414 = vld [vmem:[%s2 + $0x80] sm:$0xff]
    %v415 = vld [vmem:[%s2 + $0x88] sm:$0xff]
    %v416 = vld [vmem:[%s2 + $0x90] sm:$0xff]
    %v417 = vld [vmem:[%s2 + $0x98] sm:$0xff]
    %v418 = vld [vmem:[%s2 + $0xa0] sm:$0xff]
    %v419 = vld [vmem:[%s2 + $0xa8] sm:$0xff]
    %v420 = vld [vmem:[%s2 + $0xb0] sm:$0xff]
    %v421 = vld [vmem:[%s2 + $0xb8] sm:$0xff]
    %v422 = vld [vmem:[%s2 + $0xc0] sm:$0xff]
    %v423 = vld [vmem:[%s2 + $0xc8] sm:$0xff]
    %v424 = vld [vmem:[%s2 + $0xd0] sm:$0xff]
    %v425 = vld [vmem:[%s2 + $0xd8] sm:$0xff]
    %v426 = vld [vmem:[%s2 + $0xe0] sm:$0xff]
    %v427 = vld [vmem:[%s2 + $0xe8] sm:$0xff]
    %v428 = vld [vmem:[%s2 + $0xf0] sm:$0xff]
    %v429 = vld [vmem:[%s2 + $0xf8] sm:$0xff]
    %v430 = vld [vmem:[#allocation2] sm:$0xff]
    %v431 = vld [vmem:[#allocation2 + $0x8] sm:$0xff]
    %v432 = vld [vmem:[#allocation2 + $0x10] sm:$0xff]
    %v433 = vld [vmem:[#allocation2 + $0x18] sm:$0xff]
    %v434 = vld [vmem:[#allocation2 + $0x20] sm:$0xff]
    %v435 = vld [vmem:[#allocation2 + $0x28] sm:$0xff]
    %v436 = vld [vmem:[#allocation2 + $0x30] sm:$0xff]
    %v437 = vld [vmem:[#allocation2 + $0x38] sm:$0xff]
    %v438 = vld [vmem:[#allocation2 + $0x40] sm:$0xff]
    %v439 = vld [vmem:[#allocation2 + $0x48] sm:$0xff]
    %v440 = vld [vmem:[#allocation2 + $0x50] sm:$0xff]
    %v441 = vld [vmem:[#allocation2 + $0x58] sm:$0xff]
    %v442 = vld [vmem:[#allocation2 + $0x60] sm:$0xff]
    %v443 = vld [vmem:[#allocation2 + $0x68] sm:$0xff]
    %v444 = vld [vmem:[#allocation2 + $0x70] sm:$0xff]
    %v445 = vld [vmem:[#allocation2 + $0x78] sm:$0xff]
    %v446 = vld [vmem:[#allocation2 + $0x80] sm:$0xff]
    %v447 = vld [vmem:[#allocation2 + $0x88] sm:$0xff]
    %v448 = vld [vmem:[#allocation2 + $0x90] sm:$0xff]
    %v449 = vld [vmem:[#allocation2 + $0x98] sm:$0xff]
    %v450 = vld [vmem:[#allocation2 + $0xa0] sm:$0xff]
    %v451 = vld [vmem:[#allocation2 + $0xa8] sm:$0xff]
    %v452 = vld [vmem:[#allocation2 + $0xb0] sm:$0xff]
    %v453 = vld [vmem:[#allocation2 + $0xb8] sm:$0xff]
    %v454 = vld [vmem:[%s3] sm:$0xff]
    %v455 = vld [vmem:[%s3 + $0x8] sm:$0xff]
    %v456 = vld [vmem:[%s3 + $0x10] sm:$0xff]
    %v457 = vld [vmem:[%s3 + $0x18] sm:$0xff]
    %v458 = vld [vmem:[%s3 + $0x20] sm:$0xff]
    %v459 = vld [vmem:[%s3 + $0x28] sm:$0xff]
    %v460 = vld [vmem:[%s3 + $0x30] sm:$0xff]
    %v461 = vld [vmem:[%s3 + $0x38] sm:$0xff]
    %v462 = vld [vmem:[%s3 + $0x40] sm:$0xff]
    %v463 = vld [vmem:[%s3 + $0x48] sm:$0xff]
    %v464 = vld [vmem:[%s3 + $0x50] sm:$0xff]
    %v465 = vld [vmem:[%s3 + $0x58] sm:$0xff]
    %v466 = vld [vmem:[%s3 + $0x60] sm:$0xff]
    %v467 = vld [vmem:[%s3 + $0x68] sm:$0xff]
    %v468 = vld [vmem:[%s3 + $0x70] sm:$0xff]
    %v469 = vld [vmem:[%s3 + $0x78] sm:$0xff]
    %471 = vset.pattern.permute.xlu0 0
    %472 = vperm.xlu0 %471, %v454
    %v473 = vpop.permute.xlu0 %472
    %476 = vset.pattern.permute.xlu0 0
    %477 = vperm.xlu0 %476, %v455
    %v478 = vpop.permute.xlu0 %477
    %481 = vset.pattern.permute.xlu0 0
    %482 = vperm.xlu0 %481, %v456
    %v483 = vpop.permute.xlu0 %482
    %486 = vset.pattern.permute.xlu0 0
    %487 = vperm.xlu0 %486, %v457
    %v488 = vpop.permute.xlu0 %487
    %491 = vset.pattern.permute.xlu0 0
    %492 = vperm.xlu0 %491, %v458
    %v493 = vpop.permute.xlu0 %492
    %496 = vset.pattern.permute.xlu0 0
    %497 = vperm.xlu0 %496, %v459
    %v498 = vpop.permute.xlu0 %497
    %501 = vset.pattern.permute.xlu0 0
    %502 = vperm.xlu0 %501, %v460
    %v503 = vpop.permute.xlu0 %502
    %506 = vset.pattern.permute.xlu0 0
    %507 = vperm.xlu0 %506, %v461
    %v508 = vpop.permute.xlu0 %507
    %511 = vset.pattern.permute.xlu0 0
    %512 = vperm.xlu0 %511, %v462
    %v513 = vpop.permute.xlu0 %512
    %516 = vset.pattern.permute.xlu0 0
    %517 = vperm.xlu0 %516, %v463
    %v518 = vpop.permute.xlu0 %517
    %521 = vset.pattern.permute.xlu0 0
    %522 = vperm.xlu0 %521, %v464
    %v523 = vpop.permute.xlu0 %522
    %526 = vset.pattern.permute.xlu0 0
    %527 = vperm.xlu0 %526, %v465
    %v528 = vpop.permute.xlu0 %527
    %531 = vset.pattern.permute.xlu0 0
    %532 = vperm.xlu0 %531, %v466
    %v533 = vpop.permute.xlu0 %532
    %536 = vset.pattern.permute.xlu0 0
    %537 = vperm.xlu0 %536, %v467
    %v538 = vpop.permute.xlu0 %537
    %541 = vset.pattern.permute.xlu0 0
    %542 = vperm.xlu0 %541, %v468
    %v543 = vpop.permute.xlu0 %542
    %546 = vset.pattern.permute.xlu0 0
    %547 = vperm.xlu0 %546, %v469
    %v548 = vpop.permute.xlu0 %547
    %vm550 = vcmask 523264
    %v552 = vsel %vm550, %v399, 0
    %v555 = vsel %vm550, %v401, 0
    %v558 = vsel %vm550, %v403, 0
    %v561 = vsel %vm550, %v405, 0
    %v564 = vsel %vm550, %v407, 0
    %v567 = vsel %vm550, %v409, 0
    %v570 = vsel %vm550, %v411, 0
    %v573 = vsel %vm550, %v413, 0
    %v576 = vsel %vm550, %v415, 0
    %v579 = vsel %vm550, %v417, 0
    %v582 = vsel %vm550, %v419, 0
    %v585 = vsel %vm550, %v421, 0
    %v588 = vsel %vm550, %v423, 0
    %v591 = vsel %vm550, %v425, 0
    %v594 = vsel %vm550, %v427, 0
    %v597 = vsel %vm550, %v429, 0
    %599 = vmatprep.subr.mxu0 0.0
    %600 = vmatpush1.msra.mxu0 %v430
    %601 = vmatprep.subr.mxu0 0.0
    %602 = vmatpush1.msra.mxu0 %v431
    %603 = vmatprep.subr.mxu0 0.0
    %604 = vmatpush1.msra.mxu0 %v432
    %605 = vmatprep.subr.mxu0 0.0
    %606 = vmatpush1.msra.mxu0 %v433
    %607 = vmatprep.subr.mxu0 0.0
    %608 = vmatpush1.msra.mxu0 %v434
    %609 = vmatprep.subr.mxu0 0.0
    %610 = vmatpush1.msra.mxu0 %v435
    %611 = vmatprep.subr.mxu0 0.0
    %612 = vmatpush1.msra.mxu0 %v436
    %613 = vmatprep.subr.mxu0 0.0
    %614 = vmatpush1.msra.mxu0 %v437
    %615 = vmatprep.subr.mxu0 0.0
    %616 = vmatpush1.msra.mxu0 %v438
    %617 = vmatprep.subr.mxu0 0.0
    %618 = vmatpush1.msra.mxu0 %v439
    %619 = vmatprep.subr.mxu0 0.0
    %620 = vmatpush1.msra.mxu0 %v440
    %621 = vmatprep.subr.mxu0 0.0
    %622 = vmatpush1.msra.mxu0 %v441
    %623 = vmatprep.subr.mxu0 0.0
    %624 = vmatpush1.msra.mxu0 %v442
    %625 = vmatprep.subr.mxu0 0.0
    %626 = vmatpush1.msra.mxu0 %v443
    %627 = vmatprep.subr.mxu0 0.0
    %628 = vmatpush1.msra.mxu0 %v444
    %629 = vmatprep.subr.mxu0 0.0
    %630 = vmatpush1.msra.mxu0 %v445
    %631 = vmatprep.subr.mxu0 0.0
    %632 = vmatpush1.msra.mxu0 %v446
    %633 = vmatprep.subr.mxu0 0.0
    %634 = vmatpush1.msra.mxu0 %v447
    %635 = vmatprep.subr.mxu0 0.0
    %636 = vmatpush1.msra.mxu0 %v448
    %637 = vmatprep.subr.mxu0 0.0
    %638 = vmatpush1.msra.mxu0 %v449
    %639 = vmatprep.subr.mxu0 0.0
    %640 = vmatpush1.msra.mxu0 %v450
    %641 = vmatprep.subr.mxu0 0.0
    %642 = vmatpush1.msra.mxu0 %v451
    %643 = vmatprep.subr.mxu0 0.0
    %644 = vmatpush1.msra.mxu0 %v452
    %645 = vmatprep.subr.mxu0 0.0
    %646 = vmatpush1.msra.mxu0 %v453
    %647 = vmatprep.subr.mxu0 0.0
    %648 = vmatpush1.msra.mxu0 0.0
    %649 = vmatprep.subr.mxu0 0.0
    %650 = vmatpush1.msra.mxu0 0.0
    %651 = vmatprep.subr.mxu0 0.0
    %652 = vmatpush1.msra.mxu0 0.0
    %653 = vmatprep.subr.mxu0 0.0
    %654 = vmatpush1.msra.mxu0 0.0
    %655 = vmatprep.subr.mxu0 0.0
    %656 = vmatpush1.msra.mxu0 0.0
    %657 = vmatprep.subr.mxu0 0.0
    %658 = vmatpush1.msra.mxu0 0.0
    %659 = vmatprep.subr.mxu0 0.0
    %660 = vmatpush1.msra.mxu0 0.0
    %661 = vmatprep.subr.mxu0 0.0
    %662 = vmatpush1.msra.mxu0 0.0
    %663 = vmatprep.mubr.f32.mxu0 %v552
    %664 = vmatmul.mubr.f32.gmra.mrb[0].mxu0 %v398
    %v665 = vpop.f32.mrb[0].mxu0
    %v666 = vadd.f32 %v473, %v665
    %v667 = vpop.f32.mrb[0].mxu0
    %668 = vmatprep.mubr.f32.mxu0 %v555
    %669 = vmatmul.mubr.f32.gmra.mrb[0].mxu0 %v400
    %v670 = vpop.f32.mrb[0].mxu0
    %v671 = vadd.f32 %v478, %v670
    %v672 = vpop.f32.mrb[0].mxu0
    %673 = vmatprep.mubr.f32.mxu0 %v558
    %674 = vmatmul.mubr.f32.gmra.mrb[0].mxu0 %v402
    %v675 = vpop.f32.mrb[0].mxu0
    %v676 = vadd.f32 %v483, %v675
    %v677 = vpop.f32.mrb[0].mxu0
    %678 = vmatprep.mubr.f32.mxu0 %v561
    %679 = vmatmul.mubr.f32.gmra.mrb[0].mxu0 %v404
    %v680 = vpop.f32.mrb[0].mxu0
    %v681 = vadd.f32 %v488, %v680
    %v682 = vpop.f32.mrb[0].mxu0
    %683 = vmatprep.mubr.f32.mxu0 %v564
    %684 = vmatmul.mubr.f32.gmra.mrb[0].mxu0 %v406
    %v685 = vpop.f32.mrb[0].mxu0
    %v686 = vadd.f32 %v493, %v685
    %v687 = vpop.f32.mrb[0].mxu0
    %688 = vmatprep.mubr.f32.mxu0 %v567
    %689 = vmatmul.mubr.f32.gmra.mrb[0].mxu0 %v408
    %v690 = vpop.f32.mrb[0].mxu0
    %v691 = vadd.f32 %v498, %v690
    %v692 = vpop.f32.mrb[0].mxu0
    %693 = vmatprep.mubr.f32.mxu0 %v570
    %694 = vmatmul.mubr.f32.gmra.mrb[0].mxu0 %v410
    %v695 = vpop.f32.mrb[0].mxu0
    %v696 = vadd.f32 %v503, %v695
    %v697 = vpop.f32.mrb[0].mxu0
    %698 = vmatprep.mubr.f32.mxu0 %v573
    %699 = vmatmul.mubr.f32.gmra.mrb[0].mxu0 %v412
    %v700 = vpop.f32.mrb[0].mxu0
    %v701 = vadd.f32 %v508, %v700
    %v702 = vpop.f32.mrb[0].mxu0
    %703 = vmatprep.mubr.f32.mxu0 %v576
    %704 = vmatmul.mubr.f32.gmra.mrb[0].mxu0 %v414
    %v705 = vpop.f32.mrb[0].mxu0
    %v706 = vadd.f32 %v513, %v705
    %v707 = vpop.f32.mrb[0].mxu0
    %708 = vmatprep.mubr.f32.mxu0 %v579
    %709 = vmatmul.mubr.f32.gmra.mrb[0].mxu0 %v416
    %v710 = vpop.f32.mrb[0].mxu0
    %v711 = vadd.f32 %v518, %v710
    %v712 = vpop.f32.mrb[0].mxu0
    %713 = vmatprep.mubr.f32.mxu0 %v582
    %714 = vmatmul.mubr.f32.gmra.mrb[0].mxu0 %v418
    %v715 = vpop.f32.mrb[0].mxu0
    %v716 = vadd.f32 %v523, %v715
    %v717 = vpop.f32.mrb[0].mxu0
    %718 = vmatprep.mubr.f32.mxu0 %v585
    %719 = vmatmul.mubr.f32.gmra.mrb[0].mxu0 %v420
    %v720 = vpop.f32.mrb[0].mxu0
    %v721 = vadd.f32 %v528, %v720
    %v722 = vpop.f32.mrb[0].mxu0
    %723 = vmatprep.mubr.f32.mxu0 %v588
    %724 = vmatmul.mubr.f32.gmra.mrb[0].mxu0 %v422
    %v725 = vpop.f32.mrb[0].mxu0
    %v726 = vadd.f32 %v533, %v725
    %v727 = vpop.f32.mrb[0].mxu0
    %728 = vmatprep.mubr.f32.mxu0 %v591
    %729 = vmatmul.mubr.f32.gmra.mrb[0].mxu0 %v424
    %v730 = vpop.f32.mrb[0].mxu0
    %v731 = vadd.f32 %v538, %v730
    %v732 = vpop.f32.mrb[0].mxu0
    %733 = vmatprep.mubr.f32.mxu0 %v594
    %734 = vmatmul.mubr.f32.gmra.mrb[0].mxu0 %v426
    %v735 = vpop.f32.mrb[0].mxu0
    %v736 = vadd.f32 %v543, %v735
    %v737 = vpop.f32.mrb[0].mxu0
    %738 = vmatprep.mubr.f32.mxu0 %v597
    %739 = vmatmul.mubr.f32.gmra.mrb[0].mxu0 %v428
    %v740 = vpop.f32.mrb[0].mxu0
    %v741 = vadd.f32 %v548, %v740
    %v742 = vpop.f32.mrb[0].mxu0
    %743 = vdwg.mxu0
    %744 = vst.msk [vmem:[#allocation3] sm:$0xff] %vm28, %v666
    %745 = vst.msk [vmem:[#allocation3 + $0x8] sm:$0xff] %vm28, %v671
    %s746 = scalar_lea.vmem [#allocation3], 16
    %747 = vst.msk [vmem:[%s746] sm:$0xff] %vm28, %v676
    %748 = vst.msk [vmem:[%s746 + $0x8] sm:$0xff] %vm28, %v681
    %s749 = scalar_lea.vmem [#allocation3], 32
    %750 = vst.msk [vmem:[%s749] sm:$0xff] %vm28, %v686
    %751 = vst.msk [vmem:[%s749 + $0x8] sm:$0xff] %vm28, %v691
    %s752 = scalar_lea.vmem [#allocation3], 48
    %753 = vst.msk [vmem:[%s752] sm:$0xff] %vm28, %v696
    %754 = vst.msk [vmem:[%s752 + $0x8] sm:$0xff] %vm28, %v701
    %s755 = scalar_lea.vmem [#allocation3], 64
    %756 = vst.msk [vmem:[%s755] sm:$0xff] %vm28, %v706
    %757 = vst.msk [vmem:[%s755 + $0x8] sm:$0xff] %vm28, %v711
    %s758 = scalar_lea.vmem [#allocation3], 80
    %759 = vst.msk [vmem:[%s758] sm:$0xff] %vm28, %v716
    %760 = vst.msk [vmem:[%s758 + $0x8] sm:$0xff] %vm28, %v721
    %s761 = scalar_lea.vmem [#allocation3], 96
    %762 = vst.msk [vmem:[%s761] sm:$0xff] %vm28, %v726
    %763 = vst.msk [vmem:[%s761 + $0x8] sm:$0xff] %vm28, %v731
    %s764 = scalar_lea.vmem [#allocation3], 112
    %765 = vst.msk [vmem:[%s764] sm:$0xff] %vm28, %v736
    %766 = vst.msk [vmem:[%s764 + $0x8] sm:$0xff] %vm28, %v741
    %s767 = scalar_lea.vmem %s0, 64
    %v768 = vld [vmem:[%s767] sm:$0xff]
    %v769 = vld [vmem:[%s767 + $0x8] sm:$0xff]
    %v770 = vld [vmem:[%s767 + $0x10] sm:$0xff]
    %v771 = vld [vmem:[%s767 + $0x18] sm:$0xff]
    %v772 = vld [vmem:[%s767 + $0x20] sm:$0xff]
    %v773 = vld [vmem:[%s767 + $0x28] sm:$0xff]
    %v774 = vld [vmem:[%s767 + $0x30] sm:$0xff]
    %v775 = vld [vmem:[%s767 + $0x38] sm:$0xff]
    %v776 = vld [vmem:[%s1] sm:$0xff]
    %v777 = vld [vmem:[%s1 + $0x8] sm:$0xff]
    %v779 = vsel %vm28, %v768, 0
    %v782 = vsel %vm28, %v769, 0
    %v785 = vsel %vm28, %v770, 0
    %v788 = vsel %vm28, %v771, 0
    %v791 = vsel %vm28, %v772, 0
    %v794 = vsel %vm28, %v773, 0
    %v797 = vsel %vm28, %v774, 0
    %v800 = vsel %vm28, %v775, 0
    %802 = vmatprep.subr.mxu0 0.0
    %803 = vmatpush1.msra.mxu0 %v776
    %804 = vmatprep.subr.mxu0 0.0
    %805 = vmatpush1.msra.mxu0 %v777
    %806 = vmatprep.subr.mxu0 0.0
    %807 = vmatpush1.msra.mxu0 0.0
    %808 = vmatprep.subr.mxu0 0.0
    %809 = vmatpush1.msra.mxu0 0.0
    %810 = vmatprep.subr.mxu0 0.0
    %811 = vmatpush1.msra.mxu0 0.0
    %812 = vmatprep.subr.mxu0 0.0
    %813 = vmatpush1.msra.mxu0 0.0
    %814 = vmatprep.subr.mxu0 0.0
    %815 = vmatpush1.msra.mxu0 0.0
    %816 = vmatprep.subr.mxu0 0.0
    %817 = vmatpush1.msra.mxu0 0.0
    %818 = vmatprep.subr.mxu0 0.0
    %819 = vmatpush1.msra.mxu0 0.0
    %820 = vmatprep.subr.mxu0 0.0
    %821 = vmatpush1.msra.mxu0 0.0
    %822 = vmatprep.subr.mxu0 0.0
    %823 = vmatpush1.msra.mxu0 0.0
    %824 = vmatprep.subr.mxu0 0.0
    %825 = vmatpush1.msra.mxu0 0.0
    %826 = vmatprep.subr.mxu0 0.0
    %827 = vmatpush1.msra.mxu0 0.0
    %828 = vmatprep.subr.mxu0 0.0
    %829 = vmatpush1.msra.mxu0 0.0
    %830 = vmatprep.subr.mxu0 0.0
    %831 = vmatpush1.msra.mxu0 0.0
    %832 = vmatprep.subr.mxu0 0.0
    %833 = vmatpush1.msra.mxu0 0.0
    %834 = vmatprep.subr.mxu0 0.0
    %835 = vmatpush1.msra.mxu0 0.0
    %836 = vmatprep.subr.mxu0 0.0
    %837 = vmatpush1.msra.mxu0 0.0
    %838 = vmatprep.subr.mxu0 0.0
    %839 = vmatpush1.msra.mxu0 0.0
    %840 = vmatprep.subr.mxu0 0.0
    %841 = vmatpush1.msra.mxu0 0.0
    %842 = vmatprep.subr.mxu0 0.0
    %843 = vmatpush1.msra.mxu0 0.0
    %844 = vmatprep.subr.mxu0 0.0
    %845 = vmatpush1.msra.mxu0 0.0
    %846 = vmatprep.subr.mxu0 0.0
    %847 = vmatpush1.msra.mxu0 0.0
    %848 = vmatprep.subr.mxu0 0.0
    %849 = vmatpush1.msra.mxu0 0.0
    %850 = vmatprep.subr.mxu0 0.0
    %851 = vmatpush1.msra.mxu0 0.0
    %852 = vmatprep.subr.mxu0 0.0
    %853 = vmatpush1.msra.mxu0 0.0
    %854 = vmatprep.subr.mxu0 0.0
    %855 = vmatpush1.msra.mxu0 0.0
    %856 = vmatprep.subr.mxu0 0.0
    %857 = vmatpush1.msra.mxu0 0.0
    %858 = vmatprep.subr.mxu0 0.0
    %859 = vmatpush1.msra.mxu0 0.0
    %860 = vmatprep.subr.mxu0 0.0
    %861 = vmatpush1.msra.mxu0 0.0
    %862 = vmatprep.subr.mxu0 0.0
    %863 = vmatpush1.msra.mxu0 0.0
    %864 = vmatprep.subr.mxu0 0.0
    %865 = vmatpush1.msra.mxu0 0.0
    %866 = vmatprep.mubr.f32.mxu0 0.0
    %867 = vmatmul.mubr.f32.gmra.mrb[0].mxu0 %v779
    %v868 = vpop.f32.mrb[0].mxu0
    %v869 = vadd.f32 0.0, %v868
    %v870 = vpop.f32.mrb[0].mxu0
    %871 = vmatprep.mubr.f32.mxu0 0.0
    %872 = vmatmul.mubr.f32.gmra.mrb[0].mxu0 %v782
    %v873 = vpop.f32.mrb[0].mxu0
    %v874 = vadd.f32 0.0, %v873
    %v875 = vpop.f32.mrb[0].mxu0
    %876 = vmatprep.mubr.f32.mxu0 0.0
    %877 = vmatmul.mubr.f32.gmra.mrb[0].mxu0 %v785
    %v878 = vpop.f32.mrb[0].mxu0
    %v879 = vadd.f32 0.0, %v878
    %v880 = vpop.f32.mrb[0].mxu0
    %881 = vmatprep.mubr.f32.mxu0 0.0
    %882 = vmatmul.mubr.f32.gmra.mrb[0].mxu0 %v788
    %v883 = vpop.f32.mrb[0].mxu0
    %v884 = vadd.f32 0.0, %v883
    %v885 = vpop.f32.mrb[0].mxu0
    %886 = vmatprep.mubr.f32.mxu0 0.0
    %887 = vmatmul.mubr.f32.gmra.mrb[0].mxu0 %v791
    %v888 = vpop.f32.mrb[0].mxu0
    %v889 = vadd.f32 0.0, %v888
    %v890 = vpop.f32.mrb[0].mxu0
    %891 = vmatprep.mubr.f32.mxu0 0.0
    %892 = vmatmul.mubr.f32.gmra.mrb[0].mxu0 %v794
    %v893 = vpop.f32.mrb[0].mxu0
    %v894 = vadd.f32 0.0, %v893
    %v895 = vpop.f32.mrb[0].mxu0
    %896 = vmatprep.mubr.f32.mxu0 0.0
    %897 = vmatmul.mubr.f32.gmra.mrb[0].mxu0 %v797
    %v898 = vpop.f32.mrb[0].mxu0
    %v899 = vadd.f32 0.0, %v898
    %v900 = vpop.f32.mrb[0].mxu0
    %901 = vmatprep.mubr.f32.mxu0 0.0
    %902 = vmatmul.mubr.f32.gmra.mrb[0].mxu0 %v800
    %v903 = vpop.f32.mrb[0].mxu0
    %v904 = vadd.f32 0.0, %v903
    %v905 = vpop.f32.mrb[0].mxu0
    %906 = vdwg.mxu0
    %907 = vst.msk [vmem:[#allocation2] sm:$0xff] %vm28, %v869
    %908 = vst.msk [vmem:[#allocation2 + $0x8] sm:$0xff] %vm28, %v874
    %909 = vst.msk [vmem:[#allocation2 + $0x10] sm:$0xff] %vm28, %v879
    %910 = vst.msk [vmem:[#allocation2 + $0x18] sm:$0xff] %vm28, %v884
    %911 = vst.msk [vmem:[#allocation2 + $0x20] sm:$0xff] %vm28, %v889
    %912 = vst.msk [vmem:[#allocation2 + $0x28] sm:$0xff] %vm28, %v894
    %913 = vst.msk [vmem:[#allocation2 + $0x30] sm:$0xff] %vm28, %v899
    %914 = vst.msk [vmem:[#allocation2 + $0x38] sm:$0xff] %vm28, %v904
    %v915 = vld [vmem:[%s166] sm:$0xff]
    %v916 = vld [vmem:[%s166 + $0x8] sm:$0xff]
    %917 = vmatprep.subr.mxu0 0.0
    %918 = vmatpush1.msra.mxu0 %v915
    %919 = vmatprep.subr.mxu0 0.0
    %920 = vmatpush1.msra.mxu0 %v916
    %921 = vmatprep.subr.mxu0 0.0
    %922 = vmatpush1.msra.mxu0 0.0
    %923 = vmatprep.subr.mxu0 0.0
    %924 = vmatpush1.msra.mxu0 0.0
    %925 = vmatprep.subr.mxu0 0.0
    %926 = vmatpush1.msra.mxu0 0.0
    %927 = vmatprep.subr.mxu0 0.0
    %928 = vmatpush1.msra.mxu0 0.0
    %929 = vmatprep.subr.mxu0 0.0
    %930 = vmatpush1.msra.mxu0 0.0
    %931 = vmatprep.subr.mxu0 0.0
    %932 = vmatpush1.msra.mxu0 0.0
    %933 = vmatprep.subr.mxu0 0.0
    %934 = vmatpush1.msra.mxu0 0.0
    %935 = vmatprep.subr.mxu0 0.0
    %936 = vmatpush1.msra.mxu0 0.0
    %937 = vmatprep.subr.mxu0 0.0
    %938 = vmatpush1.msra.mxu0 0.0
    %939 = vmatprep.subr.mxu0 0.0
    %940 = vmatpush1.msra.mxu0 0.0
    %941 = vmatprep.subr.mxu0 0.0
    %942 = vmatpush1.msra.mxu0 0.0
    %943 = vmatprep.subr.mxu0 0.0
    %944 = vmatpush1.msra.mxu0 0.0
    %945 = vmatprep.subr.mxu0 0.0
    %946 = vmatpush1.msra.mxu0 0.0
    %947 = vmatprep.subr.mxu0 0.0
    %948 = vmatpush1.msra.mxu0 0.0
    %949 = vmatprep.subr.mxu0 0.0
    %950 = vmatpush1.msra.mxu0 0.0
    %951 = vmatprep.subr.mxu0 0.0
    %952 = vmatpush1.msra.mxu0 0.0
    %953 = vmatprep.subr.mxu0 0.0
    %954 = vmatpush1.msra.mxu0 0.0
    %955 = vmatprep.subr.mxu0 0.0
    %956 = vmatpush1.msra.mxu0 0.0
    %957 = vmatprep.subr.mxu0 0.0
    %958 = vmatpush1.msra.mxu0 0.0
    %959 = vmatprep.subr.mxu0 0.0
    %960 = vmatpush1.msra.mxu0 0.0
    %961 = vmatprep.subr.mxu0 0.0
    %962 = vmatpush1.msra.mxu0 0.0
    %963 = vmatprep.subr.mxu0 0.0
    %964 = vmatpush1.msra.mxu0 0.0
    %965 = vmatprep.subr.mxu0 0.0
    %966 = vmatpush1.msra.mxu0 0.0
    %967 = vmatprep.subr.mxu0 0.0
    %968 = vmatpush1.msra.mxu0 0.0
    %969 = vmatprep.subr.mxu0 0.0
    %970 = vmatpush1.msra.mxu0 0.0
    %971 = vmatprep.subr.mxu0 0.0
    %972 = vmatpush1.msra.mxu0 0.0
    %973 = vmatprep.subr.mxu0 0.0
    %974 = vmatpush1.msra.mxu0 0.0
    %975 = vmatprep.subr.mxu0 0.0
    %976 = vmatpush1.msra.mxu0 0.0
    %977 = vmatprep.subr.mxu0 0.0
    %978 = vmatpush1.msra.mxu0 0.0
    %979 = vmatprep.subr.mxu0 0.0
    %980 = vmatpush1.msra.mxu0 0.0
    %981 = vmatprep.mubr.f32.mxu0 0.0
    %982 = vmatmul.mubr.f32.gmra.mrb[0].mxu0 %v779
    %v983 = vpop.f32.mrb[0].mxu0
    %v984 = vadd.f32 0.0, %v983
    %v985 = vpop.f32.mrb[0].mxu0
    %986 = vmatprep.mubr.f32.mxu0 0.0
    %987 = vmatmul.mubr.f32.gmra.mrb[0].mxu0 %v782
    %v988 = vpop.f32.mrb[0].mxu0
    %v989 = vadd.f32 0.0, %v988
    %v990 = vpop.f32.mrb[0].mxu0
    %991 = vmatprep.mubr.f32.mxu0 0.0
    %992 = vmatmul.mubr.f32.gmra.mrb[0].mxu0 %v785
    %v993 = vpop.f32.mrb[0].mxu0
    %v994 = vadd.f32 0.0, %v993
    %v995 = vpop.f32.mrb[0].mxu0
    %996 = vmatprep.mubr.f32.mxu0 0.0
    %997 = vmatmul.mubr.f32.gmra.mrb[0].mxu0 %v788
    %v998 = vpop.f32.mrb[0].mxu0
    %v999 = vadd.f32 0.0, %v998
    %v1000 = vpop.f32.mrb[0].mxu0
    %1001 = vmatprep.mubr.f32.mxu0 0.0
    %1002 = vmatmul.mubr.f32.gmra.mrb[0].mxu0 %v791
    %v1003 = vpop.f32.mrb[0].mxu0
    %v1004 = vadd.f32 0.0, %v1003
    %v1005 = vpop.f32.mrb[0].mxu0
    %1006 = vmatprep.mubr.f32.mxu0 0.0
    %1007 = vmatmul.mubr.f32.gmra.mrb[0].mxu0 %v794
    %v1008 = vpop.f32.mrb[0].mxu0
    %v1009 = vadd.f32 0.0, %v1008
    %v1010 = vpop.f32.mrb[0].mxu0
    %1011 = vmatprep.mubr.f32.mxu0 0.0
    %1012 = vmatmul.mubr.f32.gmra.mrb[0].mxu0 %v797
    %v1013 = vpop.f32.mrb[0].mxu0
    %v1014 = vadd.f32 0.0, %v1013
    %v1015 = vpop.f32.mrb[0].mxu0
    %1016 = vmatprep.mubr.f32.mxu0 0.0
    %1017 = vmatmul.mubr.f32.gmra.mrb[0].mxu0 %v800
    %v1018 = vpop.f32.mrb[0].mxu0
    %v1019 = vadd.f32 0.0, %v1018
    %v1020 = vpop.f32.mrb[0].mxu0
    %1021 = vdwg.mxu0
    %1022 = vst.msk [vmem:[#allocation2 + $0x40] sm:$0xff] %vm28, %v984
    %1023 = vst.msk [vmem:[#allocation2 + $0x48] sm:$0xff] %vm28, %v989
    %1024 = vst.msk [vmem:[#allocation2 + $0x50] sm:$0xff] %vm28, %v994
    %1025 = vst.msk [vmem:[#allocation2 + $0x58] sm:$0xff] %vm28, %v999
    %1026 = vst.msk [vmem:[#allocation2 + $0x60] sm:$0xff] %vm28, %v1004
    %1027 = vst.msk [vmem:[#allocation2 + $0x68] sm:$0xff] %vm28, %v1009
    %1028 = vst.msk [vmem:[#allocation2 + $0x70] sm:$0xff] %vm28, %v1014
    %1029 = vst.msk [vmem:[#allocation2 + $0x78] sm:$0xff] %vm28, %v1019
    %v1030 = vld [vmem:[%s282] sm:$0xff]
    %v1031 = vld [vmem:[%s282 + $0x8] sm:$0xff]
    %1032 = vmatprep.subr.mxu0 0.0
    %1033 = vmatpush1.msra.mxu0 %v1030
    %1034 = vmatprep.subr.mxu0 0.0
    %1035 = vmatpush1.msra.mxu0 %v1031
    %1036 = vmatprep.subr.mxu0 0.0
    %1037 = vmatpush1.msra.mxu0 0.0
    %1038 = vmatprep.subr.mxu0 0.0
    %1039 = vmatpush1.msra.mxu0 0.0
    %1040 = vmatprep.subr.mxu0 0.0
    %1041 = vmatpush1.msra.mxu0 0.0
    %1042 = vmatprep.subr.mxu0 0.0
    %1043 = vmatpush1.msra.mxu0 0.0
    %1044 = vmatprep.subr.mxu0 0.0
    %1045 = vmatpush1.msra.mxu0 0.0
    %1046 = vmatprep.subr.mxu0 0.0
    %1047 = vmatpush1.msra.mxu0 0.0
    %1048 = vmatprep.subr.mxu0 0.0
    %1049 = vmatpush1.msra.mxu0 0.0
    %1050 = vmatprep.subr.mxu0 0.0
    %1051 = vmatpush1.msra.mxu0 0.0
    %1052 = vmatprep.subr.mxu0 0.0
    %1053 = vmatpush1.msra.mxu0 0.0
    %1054 = vmatprep.subr.mxu0 0.0
    %1055 = vmatpush1.msra.mxu0 0.0
    %1056 = vmatprep.subr.mxu0 0.0
    %1057 = vmatpush1.msra.mxu0 0.0
    %1058 = vmatprep.subr.mxu0 0.0
    %1059 = vmatpush1.msra.mxu0 0.0
    %1060 = vmatprep.subr.mxu0 0.0
    %1061 = vmatpush1.msra.mxu0 0.0
    %1062 = vmatprep.subr.mxu0 0.0
    %1063 = vmatpush1.msra.mxu0 0.0
    %1064 = vmatprep.subr.mxu0 0.0
    %1065 = vmatpush1.msra.mxu0 0.0
    %1066 = vmatprep.subr.mxu0 0.0
    %1067 = vmatpush1.msra.mxu0 0.0
    %1068 = vmatprep.subr.mxu0 0.0
    %1069 = vmatpush1.msra.mxu0 0.0
    %1070 = vmatprep.subr.mxu0 0.0
    %1071 = vmatpush1.msra.mxu0 0.0
    %1072 = vmatprep.subr.mxu0 0.0
    %1073 = vmatpush1.msra.mxu0 0.0
    %1074 = vmatprep.subr.mxu0 0.0
    %1075 = vmatpush1.msra.mxu0 0.0
    %1076 = vmatprep.subr.mxu0 0.0
    %1077 = vmatpush1.msra.mxu0 0.0
    %1078 = vmatprep.subr.mxu0 0.0
    %1079 = vmatpush1.msra.mxu0 0.0
    %1080 = vmatprep.subr.mxu0 0.0
    %1081 = vmatpush1.msra.mxu0 0.0
    %1082 = vmatprep.subr.mxu0 0.0
    %1083 = vmatpush1.msra.mxu0 0.0
    %1084 = vmatprep.subr.mxu0 0.0
    %1085 = vmatpush1.msra.mxu0 0.0
    %1086 = vmatprep.subr.mxu0 0.0
    %1087 = vmatpush1.msra.mxu0 0.0
    %1088 = vmatprep.subr.mxu0 0.0
    %1089 = vmatpush1.msra.mxu0 0.0
    %1090 = vmatprep.subr.mxu0 0.0
    %1091 = vmatpush1.msra.mxu0 0.0
    %1092 = vmatprep.subr.mxu0 0.0
    %1093 = vmatpush1.msra.mxu0 0.0
    %1094 = vmatprep.subr.mxu0 0.0
    %1095 = vmatpush1.msra.mxu0 0.0
    %1096 = vmatprep.mubr.f32.mxu0 0.0
    %1097 = vmatmul.mubr.f32.gmra.mrb[0].mxu0 %v779
    %v1098 = vpop.f32.mrb[0].mxu0
    %v1099 = vadd.f32 0.0, %v1098
    %v1100 = vpop.f32.mrb[0].mxu0
    %1101 = vmatprep.mubr.f32.mxu0 0.0
    %1102 = vmatmul.mubr.f32.gmra.mrb[0].mxu0 %v782
    %v1103 = vpop.f32.mrb[0].mxu0
    %v1104 = vadd.f32 0.0, %v1103
    %v1105 = vpop.f32.mrb[0].mxu0
    %1106 = vmatprep.mubr.f32.mxu0 0.0
    %1107 = vmatmul.mubr.f32.gmra.mrb[0].mxu0 %v785
    %v1108 = vpop.f32.mrb[0].mxu0
    %v1109 = vadd.f32 0.0, %v1108
    %v1110 = vpop.f32.mrb[0].mxu0
    %1111 = vmatprep.mubr.f32.mxu0 0.0
    %1112 = vmatmul.mubr.f32.gmra.mrb[0].mxu0 %v788
    %v1113 = vpop.f32.mrb[0].mxu0
    %v1114 = vadd.f32 0.0, %v1113
    %v1115 = vpop.f32.mrb[0].mxu0
    %1116 = vmatprep.mubr.f32.mxu0 0.0
    %1117 = vmatmul.mubr.f32.gmra.mrb[0].mxu0 %v791
    %v1118 = vpop.f32.mrb[0].mxu0
    %v1119 = vadd.f32 0.0, %v1118
    %v1120 = vpop.f32.mrb[0].mxu0
    %1121 = vmatprep.mubr.f32.mxu0 0.0
    %1122 = vmatmul.mubr.f32.gmra.mrb[0].mxu0 %v794
    %v1123 = vpop.f32.mrb[0].mxu0
    %v1124 = vadd.f32 0.0, %v1123
    %v1125 = vpop.f32.mrb[0].mxu0
    %1126 = vmatprep.mubr.f32.mxu0 0.0
    %1127 = vmatmul.mubr.f32.gmra.mrb[0].mxu0 %v797
    %v1128 = vpop.f32.mrb[0].mxu0
    %v1129 = vadd.f32 0.0, %v1128
    %v1130 = vpop.f32.mrb[0].mxu0
    %1131 = vmatprep.mubr.f32.mxu0 0.0
    %1132 = vmatmul.mubr.f32.gmra.mrb[0].mxu0 %v800
    %v1133 = vpop.f32.mrb[0].mxu0
    %v1134 = vadd.f32 0.0, %v1133
    %v1135 = vpop.f32.mrb[0].mxu0
    %1136 = vdwg.mxu0
    %1137 = vst.msk [vmem:[#allocation2 + $0x80] sm:$0xff] %vm28, %v1099
    %1138 = vst.msk [vmem:[#allocation2 + $0x88] sm:$0xff] %vm28, %v1104
    %1139 = vst.msk [vmem:[#allocation2 + $0x90] sm:$0xff] %vm28, %v1109
    %1140 = vst.msk [vmem:[#allocation2 + $0x98] sm:$0xff] %vm28, %v1114
    %1141 = vst.msk [vmem:[#allocation2 + $0xa0] sm:$0xff] %vm28, %v1119
    %1142 = vst.msk [vmem:[#allocation2 + $0xa8] sm:$0xff] %vm28, %v1124
    %1143 = vst.msk [vmem:[#allocation2 + $0xb0] sm:$0xff] %vm28, %v1129
    %1144 = vst.msk [vmem:[#allocation2 + $0xb8] sm:$0xff] %vm28, %v1134
    %v1145 = vld [vmem:[%s2] sm:$0xff]
    %v1146 = vld [vmem:[%s2 + $0x8] sm:$0xff]
    %v1147 = vld [vmem:[%s2 + $0x10] sm:$0xff]
    %v1148 = vld [vmem:[%s2 + $0x18] sm:$0xff]
    %v1149 = vld [vmem:[%s2 + $0x20] sm:$0xff]
    %v1150 = vld [vmem:[%s2 + $0x28] sm:$0xff]
    %v1151 = vld [vmem:[%s2 + $0x30] sm:$0xff]
    %v1152 = vld [vmem:[%s2 + $0x38] sm:$0xff]
    %v1153 = vld [vmem:[%s2 + $0x40] sm:$0xff]
    %v1154 = vld [vmem:[%s2 + $0x48] sm:$0xff]
    %v1155 = vld [vmem:[%s2 + $0x50] sm:$0xff]
    %v1156 = vld [vmem:[%s2 + $0x58] sm:$0xff]
    %v1157 = vld [vmem:[%s2 + $0x60] sm:$0xff]
    %v1158 = vld [vmem:[%s2 + $0x68] sm:$0xff]
    %v1159 = vld [vmem:[%s2 + $0x70] sm:$0xff]
    %v1160 = vld [vmem:[%s2 + $0x78] sm:$0xff]
    %v1161 = vld [vmem:[%s2 + $0x80] sm:$0xff]
    %v1162 = vld [vmem:[%s2 + $0x88] sm:$0xff]
    %v1163 = vld [vmem:[%s2 + $0x90] sm:$0xff]
    %v1164 = vld [vmem:[%s2 + $0x98] sm:$0xff]
    %v1165 = vld [vmem:[%s2 + $0xa0] sm:$0xff]
    %v1166 = vld [vmem:[%s2 + $0xa8] sm:$0xff]
    %v1167 = vld [vmem:[%s2 + $0xb0] sm:$0xff]
    %v1168 = vld [vmem:[%s2 + $0xb8] sm:$0xff]
    %v1169 = vld [vmem:[%s2 + $0xc0] sm:$0xff]
    %v1170 = vld [vmem:[%s2 + $0xc8] sm:$0xff]
    %v1171 = vld [vmem:[%s2 + $0xd0] sm:$0xff]
    %v1172 = vld [vmem:[%s2 + $0xd8] sm:$0xff]
    %v1173 = vld [vmem:[%s2 + $0xe0] sm:$0xff]
    %v1174 = vld [vmem:[%s2 + $0xe8] sm:$0xff]
    %v1175 = vld [vmem:[%s2 + $0xf0] sm:$0xff]
    %v1176 = vld [vmem:[%s2 + $0xf8] sm:$0xff]
    %v1177 = vld [vmem:[#allocation2] sm:$0xff]
    %v1178 = vld [vmem:[#allocation2 + $0x8] sm:$0xff]
    %v1179 = vld [vmem:[#allocation2 + $0x10] sm:$0xff]
    %v1180 = vld [vmem:[#allocation2 + $0x18] sm:$0xff]
    %v1181 = vld [vmem:[#allocation2 + $0x20] sm:$0xff]
    %v1182 = vld [vmem:[#allocation2 + $0x28] sm:$0xff]
    %v1183 = vld [vmem:[#allocation2 + $0x30] sm:$0xff]
    %v1184 = vld [vmem:[#allocation2 + $0x38] sm:$0xff]
    %v1185 = vld [vmem:[#allocation2 + $0x40] sm:$0xff]
    %v1186 = vld [vmem:[#allocation2 + $0x48] sm:$0xff]
    %v1187 = vld [vmem:[#allocation2 + $0x50] sm:$0xff]
    %v1188 = vld [vmem:[#allocation2 + $0x58] sm:$0xff]
    %v1189 = vld [vmem:[#allocation2 + $0x60] sm:$0xff]
    %v1190 = vld [vmem:[#allocation2 + $0x68] sm:$0xff]
    %v1191 = vld [vmem:[#allocation2 + $0x70] sm:$0xff]
    %v1192 = vld [vmem:[#allocation2 + $0x78] sm:$0xff]
    %v1193 = vld [vmem:[#allocation2 + $0x80] sm:$0xff]
    %v1194 = vld [vmem:[#allocation2 + $0x88] sm:$0xff]
    %v1195 = vld [vmem:[#allocation2 + $0x90] sm:$0xff]
    %v1196 = vld [vmem:[#allocation2 + $0x98] sm:$0xff]
    %v1197 = vld [vmem:[#allocation2 + $0xa0] sm:$0xff]
    %v1198 = vld [vmem:[#allocation2 + $0xa8] sm:$0xff]
    %v1199 = vld [vmem:[#allocation2 + $0xb0] sm:$0xff]
    %v1200 = vld [vmem:[#allocation2 + $0xb8] sm:$0xff]
    %v1201 = vld [vmem:[%s3] sm:$0xff]
    %v1202 = vld [vmem:[%s3 + $0x8] sm:$0xff]
    %v1203 = vld [vmem:[%s3 + $0x10] sm:$0xff]
    %v1204 = vld [vmem:[%s3 + $0x18] sm:$0xff]
    %v1205 = vld [vmem:[%s3 + $0x20] sm:$0xff]
    %v1206 = vld [vmem:[%s3 + $0x28] sm:$0xff]
    %v1207 = vld [vmem:[%s3 + $0x30] sm:$0xff]
    %v1208 = vld [vmem:[%s3 + $0x38] sm:$0xff]
    %v1209 = vld [vmem:[%s3 + $0x40] sm:$0xff]
    %v1210 = vld [vmem:[%s3 + $0x48] sm:$0xff]
    %v1211 = vld [vmem:[%s3 + $0x50] sm:$0xff]
    %v1212 = vld [vmem:[%s3 + $0x58] sm:$0xff]
    %v1213 = vld [vmem:[%s3 + $0x60] sm:$0xff]
    %v1214 = vld [vmem:[%s3 + $0x68] sm:$0xff]
    %v1215 = vld [vmem:[%s3 + $0x70] sm:$0xff]
    %v1216 = vld [vmem:[%s3 + $0x78] sm:$0xff]
    %1218 = vset.pattern.permute.xlu0 0
    %1219 = vperm.xlu0 %1218, %v1201
    %v1220 = vpop.permute.xlu0 %1219
    %1223 = vset.pattern.permute.xlu0 0
    %1224 = vperm.xlu0 %1223, %v1202
    %v1225 = vpop.permute.xlu0 %1224
    %1228 = vset.pattern.permute.xlu0 0
    %1229 = vperm.xlu0 %1228, %v1203
    %v1230 = vpop.permute.xlu0 %1229
    %1233 = vset.pattern.permute.xlu0 0
    %1234 = vperm.xlu0 %1233, %v1204
    %v1235 = vpop.permute.xlu0 %1234
    %1238 = vset.pattern.permute.xlu0 0
    %1239 = vperm.xlu0 %1238, %v1205
    %v1240 = vpop.permute.xlu0 %1239
    %1243 = vset.pattern.permute.xlu0 0
    %1244 = vperm.xlu0 %1243, %v1206
    %v1245 = vpop.permute.xlu0 %1244
    %1248 = vset.pattern.permute.xlu0 0
    %1249 = vperm.xlu0 %1248, %v1207
    %v1250 = vpop.permute.xlu0 %1249
    %1253 = vset.pattern.permute.xlu0 0
    %1254 = vperm.xlu0 %1253, %v1208
    %v1255 = vpop.permute.xlu0 %1254
    %1258 = vset.pattern.permute.xlu0 0
    %1259 = vperm.xlu0 %1258, %v1209
    %v1260 = vpop.permute.xlu0 %1259
    %1263 = vset.pattern.permute.xlu0 0
    %1264 = vperm.xlu0 %1263, %v1210
    %v1265 = vpop.permute.xlu0 %1264
    %1268 = vset.pattern.permute.xlu0 0
    %1269 = vperm.xlu0 %1268, %v1211
    %v1270 = vpop.permute.xlu0 %1269
    %1273 = vset.pattern.permute.xlu0 0
    %1274 = vperm.xlu0 %1273, %v1212
    %v1275 = vpop.permute.xlu0 %1274
    %1278 = vset.pattern.permute.xlu0 0
    %1279 = vperm.xlu0 %1278, %v1213
    %v1280 = vpop.permute.xlu0 %1279
    %1283 = vset.pattern.permute.xlu0 0
    %1284 = vperm.xlu0 %1283, %v1214
    %v1285 = vpop.permute.xlu0 %1284
    %1288 = vset.pattern.permute.xlu0 0
    %1289 = vperm.xlu0 %1288, %v1215
    %v1290 = vpop.permute.xlu0 %1289
    %1293 = vset.pattern.permute.xlu0 0
    %1294 = vperm.xlu0 %1293, %v1216
    %v1295 = vpop.permute.xlu0 %1294
    %v1298 = vsel %vm550, %v1146, 0
    %v1301 = vsel %vm550, %v1148, 0
    %v1304 = vsel %vm550, %v1150, 0
    %v1307 = vsel %vm550, %v1152, 0
    %v1310 = vsel %vm550, %v1154, 0
    %v1313 = vsel %vm550, %v1156, 0
    %v1316 = vsel %vm550, %v1158, 0
    %v1319 = vsel %vm550, %v1160, 0
    %v1322 = vsel %vm550, %v1162, 0
    %v1325 = vsel %vm550, %v1164, 0
    %v1328 = vsel %vm550, %v1166, 0
    %v1331 = vsel %vm550, %v1168, 0
    %v1334 = vsel %vm550, %v1170, 0
    %v1337 = vsel %vm550, %v1172, 0
    %v1340 = vsel %vm550, %v1174, 0
    %v1343 = vsel %vm550, %v1176, 0
    %1345 = vmatprep.subr.mxu0 0.0
    %1346 = vmatpush1.msra.mxu0 %v1177
    %1347 = vmatprep.subr.mxu0 0.0
    %1348 = vmatpush1.msra.mxu0 %v1178
    %1349 = vmatprep.subr.mxu0 0.0
    %1350 = vmatpush1.msra.mxu0 %v1179
    %1351 = vmatprep.subr.mxu0 0.0
    %1352 = vmatpush1.msra.mxu0 %v1180
    %1353 = vmatprep.subr.mxu0 0.0
    %1354 = vmatpush1.msra.mxu0 %v1181
    %1355 = vmatprep.subr.mxu0 0.0
    %1356 = vmatpush1.msra.mxu0 %v1182
    %1357 = vmatprep.subr.mxu0 0.0
    %1358 = vmatpush1.msra.mxu0 %v1183
    %1359 = vmatprep.subr.mxu0 0.0
    %1360 = vmatpush1.msra.mxu0 %v1184
    %1361 = vmatprep.subr.mxu0 0.0
    %1362 = vmatpush1.msra.mxu0 %v1185
    %1363 = vmatprep.subr.mxu0 0.0
    %1364 = vmatpush1.msra.mxu0 %v1186
    %1365 = vmatprep.subr.mxu0 0.0
    %1366 = vmatpush1.msra.mxu0 %v1187
    %1367 = vmatprep.subr.mxu0 0.0
    %1368 = vmatpush1.msra.mxu0 %v1188
    %1369 = vmatprep.subr.mxu0 0.0
    %1370 = vmatpush1.msra.mxu0 %v1189
    %1371 = vmatprep.subr.mxu0 0.0
    %1372 = vmatpush1.msra.mxu0 %v1190
    %1373 = vmatprep.subr.mxu0 0.0
    %1374 = vmatpush1.msra.mxu0 %v1191
    %1375 = vmatprep.subr.mxu0 0.0
    %1376 = vmatpush1.msra.mxu0 %v1192
    %1377 = vmatprep.subr.mxu0 0.0
    %1378 = vmatpush1.msra.mxu0 %v1193
    %1379 = vmatprep.subr.mxu0 0.0
    %1380 = vmatpush1.msra.mxu0 %v1194
    %1381 = vmatprep.subr.mxu0 0.0
    %1382 = vmatpush1.msra.mxu0 %v1195
    %1383 = vmatprep.subr.mxu0 0.0
    %1384 = vmatpush1.msra.mxu0 %v1196
    %1385 = vmatprep.subr.mxu0 0.0
    %1386 = vmatpush1.msra.mxu0 %v1197
    %1387 = vmatprep.subr.mxu0 0.0
    %1388 = vmatpush1.msra.mxu0 %v1198
    %1389 = vmatprep.subr.mxu0 0.0
    %1390 = vmatpush1.msra.mxu0 %v1199
    %1391 = vmatprep.subr.mxu0 0.0
    %1392 = vmatpush1.msra.mxu0 %v1200
    %1393 = vmatprep.subr.mxu0 0.0
    %1394 = vmatpush1.msra.mxu0 0.0
    %1395 = vmatprep.subr.mxu0 0.0
    %1396 = vmatpush1.msra.mxu0 0.0
    %1397 = vmatprep.subr.mxu0 0.0
    %1398 = vmatpush1.msra.mxu0 0.0
    %1399 = vmatprep.subr.mxu0 0.0
    %1400 = vmatpush1.msra.mxu0 0.0
    %1401 = vmatprep.subr.mxu0 0.0
    %1402 = vmatpush1.msra.mxu0 0.0
    %1403 = vmatprep.subr.mxu0 0.0
    %1404 = vmatpush1.msra.mxu0 0.0
    %1405 = vmatprep.subr.mxu0 0.0
    %1406 = vmatpush1.msra.mxu0 0.0
    %1407 = vmatprep.subr.mxu0 0.0
    %1408 = vmatpush1.msra.mxu0 0.0
    %1409 = vmatprep.mubr.f32.mxu0 %v1298
    %1410 = vmatmul.mubr.f32.gmra.mrb[0].mxu0 %v1145
    %v1411 = vpop.f32.mrb[0].mxu0
    %v1412 = vadd.f32 %v1220, %v1411
    %v1413 = vpop.f32.mrb[0].mxu0
    %1414 = vmatprep.mubr.f32.mxu0 %v1301
    %1415 = vmatmul.mubr.f32.gmra.mrb[0].mxu0 %v1147
    %v1416 = vpop.f32.mrb[0].mxu0
    %v1417 = vadd.f32 %v1225, %v1416
    %v1418 = vpop.f32.mrb[0].mxu0
    %1419 = vmatprep.mubr.f32.mxu0 %v1304
    %1420 = vmatmul.mubr.f32.gmra.mrb[0].mxu0 %v1149
    %v1421 = vpop.f32.mrb[0].mxu0
    %v1422 = vadd.f32 %v1230, %v1421
    %v1423 = vpop.f32.mrb[0].mxu0
    %1424 = vmatprep.mubr.f32.mxu0 %v1307
    %1425 = vmatmul.mubr.f32.gmra.mrb[0].mxu0 %v1151
    %v1426 = vpop.f32.mrb[0].mxu0
    %v1427 = vadd.f32 %v1235, %v1426
    %v1428 = vpop.f32.mrb[0].mxu0
    %1429 = vmatprep.mubr.f32.mxu0 %v1310
    %1430 = vmatmul.mubr.f32.gmra.mrb[0].mxu0 %v1153
    %v1431 = vpop.f32.mrb[0].mxu0
    %v1432 = vadd.f32 %v1240, %v1431
    %v1433 = vpop.f32.mrb[0].mxu0
    %1434 = vmatprep.mubr.f32.mxu0 %v1313
    %1435 = vmatmul.mubr.f32.gmra.mrb[0].mxu0 %v1155
    %v1436 = vpop.f32.mrb[0].mxu0
    %v1437 = vadd.f32 %v1245, %v1436
    %v1438 = vpop.f32.mrb[0].mxu0
    %1439 = vmatprep.mubr.f32.mxu0 %v1316
    %1440 = vmatmul.mubr.f32.gmra.mrb[0].mxu0 %v1157
    %v1441 = vpop.f32.mrb[0].mxu0
    %v1442 = vadd.f32 %v1250, %v1441
    %v1443 = vpop.f32.mrb[0].mxu0
    %1444 = vmatprep.mubr.f32.mxu0 %v1319
    %1445 = vmatmul.mubr.f32.gmra.mrb[0].mxu0 %v1159
    %v1446 = vpop.f32.mrb[0].mxu0
    %v1447 = vadd.f32 %v1255, %v1446
    %v1448 = vpop.f32.mrb[0].mxu0
    %1449 = vmatprep.mubr.f32.mxu0 %v1322
    %1450 = vmatmul.mubr.f32.gmra.mrb[0].mxu0 %v1161
    %v1451 = vpop.f32.mrb[0].mxu0
    %v1452 = vadd.f32 %v1260, %v1451
    %v1453 = vpop.f32.mrb[0].mxu0
    %1454 = vmatprep.mubr.f32.mxu0 %v1325
    %1455 = vmatmul.mubr.f32.gmra.mrb[0].mxu0 %v1163
    %v1456 = vpop.f32.mrb[0].mxu0
    %v1457 = vadd.f32 %v1265, %v1456
    %v1458 = vpop.f32.mrb[0].mxu0
    %1459 = vmatprep.mubr.f32.mxu0 %v1328
    %1460 = vmatmul.mubr.f32.gmra.mrb[0].mxu0 %v1165
    %v1461 = vpop.f32.mrb[0].mxu0
    %v1462 = vadd.f32 %v1270, %v1461
    %v1463 = vpop.f32.mrb[0].mxu0
    %1464 = vmatprep.mubr.f32.mxu0 %v1331
    %1465 = vmatmul.mubr.f32.gmra.mrb[0].mxu0 %v1167
    %v1466 = vpop.f32.mrb[0].mxu0
    %v1467 = vadd.f32 %v1275, %v1466
    %v1468 = vpop.f32.mrb[0].mxu0
    %1469 = vmatprep.mubr.f32.mxu0 %v1334
    %1470 = vmatmul.mubr.f32.gmra.mrb[0].mxu0 %v1169
    %v1471 = vpop.f32.mrb[0].mxu0
    %v1472 = vadd.f32 %v1280, %v1471
    %v1473 = vpop.f32.mrb[0].mxu0
    %1474 = vmatprep.mubr.f32.mxu0 %v1337
    %1475 = vmatmul.mubr.f32.gmra.mrb[0].mxu0 %v1171
    %v1476 = vpop.f32.mrb[0].mxu0
    %v1477 = vadd.f32 %v1285, %v1476
    %v1478 = vpop.f32.mrb[0].mxu0
    %1479 = vmatprep.mubr.f32.mxu0 %v1340
    %1480 = vmatmul.mubr.f32.gmra.mrb[0].mxu0 %v1173
    %v1481 = vpop.f32.mrb[0].mxu0
    %v1482 = vadd.f32 %v1290, %v1481
    %v1483 = vpop.f32.mrb[0].mxu0
    %1484 = vmatprep.mubr.f32.mxu0 %v1343
    %1485 = vmatmul.mubr.f32.gmra.mrb[0].mxu0 %v1175
    %v1486 = vpop.f32.mrb[0].mxu0
    %v1487 = vadd.f32 %v1295, %v1486
    %v1488 = vpop.f32.mrb[0].mxu0
    %1489 = vdwg.mxu0
    %s1490 = scalar_lea.vmem [#allocation3], 128
    %1491 = vst.msk [vmem:[%s1490] sm:$0xff] %vm28, %v1412
    %1492 = vst.msk [vmem:[%s1490 + $0x8] sm:$0xff] %vm28, %v1417
    %s1493 = scalar_lea.vmem [#allocation3], 144
    %1494 = vst.msk [vmem:[%s1493] sm:$0xff] %vm28, %v1422
    %1495 = vst.msk [vmem:[%s1493 + $0x8] sm:$0xff] %vm28, %v1427
    %s1496 = scalar_lea.vmem [#allocation3], 160
    %1497 = vst.msk [vmem:[%s1496] sm:$0xff] %vm28, %v1432
    %1498 = vst.msk [vmem:[%s1496 + $0x8] sm:$0xff] %vm28, %v1437
    %s1499 = scalar_lea.vmem [#allocation3], 176
    %1500 = vst.msk [vmem:[%s1499] sm:$0xff] %vm28, %v1442
    %1501 = vst.msk [vmem:[%s1499 + $0x8] sm:$0xff] %vm28, %v1447
    %s1502 = scalar_lea.vmem [#allocation3], 192
    %1503 = vst.msk [vmem:[%s1502] sm:$0xff] %vm28, %v1452
    %1504 = vst.msk [vmem:[%s1502 + $0x8] sm:$0xff] %vm28, %v1457
    %s1505 = scalar_lea.vmem [#allocation3], 208
    %1506 = vst.msk [vmem:[%s1505] sm:$0xff] %vm28, %v1462
    %1507 = vst.msk [vmem:[%s1505 + $0x8] sm:$0xff] %vm28, %v1467
    %s1508 = scalar_lea.vmem [#allocation3], 224
    %1509 = vst.msk [vmem:[%s1508] sm:$0xff] %vm28, %v1472
    %1510 = vst.msk [vmem:[%s1508 + $0x8] sm:$0xff] %vm28, %v1477
    %s1511 = scalar_lea.vmem [#allocation3], 240
    %1512 = vst.msk [vmem:[%s1511] sm:$0xff] %vm28, %v1482
    %1513 = vst.msk [vmem:[%s1511 + $0x8] sm:$0xff] %vm28, %v1487
    // Predicated region
    $region18: #{conv_same_pad_forward.1} parent=1 // pred_check
      _
    $region19: #{conv_same_pad_forward.1} parent=1 // pred_check_branch
      %1515 = sbr.rel (0) target = $region21
    $region20: #{conv_same_pad_forward.1} parent=1 // pred_region
      %s1517 = ssub.s32 4096, 4096
      %1518 = vsyncadd [#allocation4], %s1517
      %s1519 = sshll.u32 [#allocation3], 4
      %s1520 = int_to_ptr.vmem [resolvable:$true] %s1519
      %1525 = dma.vmem_to_hbm [thread:$0]  %s1520, 4096, %s4, [#allocation4], 128, 128, 8
    $region21: #{conv_same_pad_forward.1} parent=1 // pred_fallthru
      _
    // Predicated region
    $region22: #{conv_same_pad_forward.1} parent=1 // pred_check
      _
    $region23: #{conv_same_pad_forward.1} parent=1 // pred_check_branch
      %1527 = sbr.rel (0) target = $region25
    $region24: #{conv_same_pad_forward.1} parent=1 // pred_region
      %1528 = dma.done [#allocation4], 4096
    $region25: #{conv_same_pad_forward.1} parent=1 // pred_fallthru
      _
    %1529 = vsyncpa [#allocation4], 1

</llo_original>
